<compile_context>
chip_gen: v7x
topology: tpu7x:2x2x1
jax: 0.10.0
libtpu: 0.0.40
codegen_flags: <defaults>
</compile_context>

<pallas_src>
import functools
import math

import jax
import jax.numpy as jnp
from jax.experimental import pallas as pl
from jax.experimental.pallas import tpu as pltpu


_LANE = 128          # lane (last-dim) tile width
_SUBLANE_BF16 = 16   # batch rounded to 16 so bf16 operands fill packed sublanes
_NEG = -1e30         # finite "-inf" used to mask padded vocab columns


def _round_up(x, m):
    return (x + m - 1) // m * m


# ---------------------------------------------------------------------------
# Kernel
# ---------------------------------------------------------------------------
def decoder_rnn_kernel(xh_ref, h_ref, w_g_ref, b_g_ref, w_out_ref, b_out_ref,
                       logits_ref, lse_ref, h_new_ref,
                       m_scr, l_scr, hb16_scr,
                       *, hp, o_actual, op_total, tile_o):
    """One GRU step fused with a vocab-tiled Linear + online log-sum-exp.

    Grid axis 0 walks tiles of the padded vocabulary.  The GRU step runs once
    (first tile).  Every step computes one (Bp, tile_o) logits tile, streams
    it straight to the tiled output and updates running max / sum-exp; the
    last step emits lse = m + log(l).  The log-softmax subtraction happens
    outside the kernel (or lse can feed a sampler/argmax directly).
    """
    j = pl.program_id(0)
    last = pl.num_programs(0) - 1

    # ---- GRU cell: runs once, on the first vocab tile ----------------------
    @pl.when(j == 0)
    def _gru_step():
        xh = xh_ref[...]                                     # (Bp, 2Hp) bf16
        h = h_ref[...]                                       # (Bp, Hp)  f32
        # One fused MXU call: [x | h] @ W -> [r, z, i_n, h_n] pre-activations,
        # each gate block 128-lane aligned, biases pre-folded per block.
        g = jnp.dot(xh, w_g_ref[...],
                    preferred_element_type=jnp.float32) + b_g_ref[...]
        r = jax.nn.sigmoid(g[:, 0:hp])
        z = jax.nn.sigmoid(g[:, hp:2 * hp])
        n = jnp.tanh(g[:, 2 * hp:3 * hp] + r * g[:, 3 * hp:4 * hp])
        h_new = (1.0 - z) * n + z * h
        h_new_ref[...] = h_new                               # f32 output
        hb16_scr[...] = h_new.astype(jnp.bfloat16)           # cast once
        m_scr[...] = jnp.full(m_scr.shape, _NEG, m_scr.dtype)
        l_scr[...] = jnp.zeros(l_scr.shape, l_scr.dtype)

    # ---- Output projection for this vocab tile ------------------------------
    logits = jnp.dot(hb16_scr[...], w_out_ref[...],
                     preferred_element_type=jnp.float32) + b_out_ref[...]
    logits_ref[...] = logits                                 # raw logits tile

    def _online_lse(lgts):
        m_prev = m_scr[...]
        m_new = jnp.maximum(m_prev, jnp.max(lgts, axis=-1, keepdims=True))
        l_scr[...] = (l_scr[...] * jnp.exp(m_prev - m_new)
                      + jnp.sum(jnp.exp(lgts - m_new), axis=-1, keepdims=True))
        m_scr[...] = m_new

    if o_actual == op_total:
        # No padded vocab columns anywhere: no masking needed.
        _online_lse(logits)
    else:
        # Padded columns live only in the last tile; mask only there.
        @pl.when(j != last)
        def _():
            _online_lse(logits)

        @pl.when(j == last)
        def _():
            col = (jax.lax.broadcasted_iota(jnp.int32, logits.shape, 1)
                   + j * tile_o)
            _online_lse(jnp.where(col < o_actual, logits, _NEG))

    @pl.when(j == last)
    def _finalize():
        lse_ref[...] = m_scr[...] + jnp.log(l_scr[...])


# ---------------------------------------------------------------------------
# Parameter setup / packing (plain-JAX glue)
# ---------------------------------------------------------------------------
def init_params(key, hidden_size, output_size):
    """Deterministic synthetic params (PyTorch-like init). Weights are stored
    pre-transposed as (in_features, out_features); matmul weights in bf16,
    biases in f32. GRU gate order follows PyTorch: [r, z, n]."""
    ks = jax.random.split(key, 7)
    bound = 1.0 / math.sqrt(hidden_size)
    u = lambda k, shape: jax.random.uniform(k, shape, jnp.float32, -bound, bound)
    embedding = jax.random.normal(ks[0], (output_size, hidden_size),
                                  jnp.float32).astype(jnp.bfloat16)
    w_ih = u(ks[1], (hidden_size, 3 * hidden_size)).astype(jnp.bfloat16)
    w_hh = u(ks[2], (hidden_size, 3 * hidden_size)).astype(jnp.bfloat16)
    b_ih = u(ks[3], (1, 3 * hidden_size))
    b_hh = u(ks[4], (1, 3 * hidden_size))
    w_out = u(ks[5], (hidden_size, output_size)).astype(jnp.bfloat16)
    b_out = u(ks[6], (1, output_size))
    return dict(embedding=embedding, w_ih=w_ih, w_hh=w_hh, b_ih=b_ih,
                b_hh=b_hh, w_out=w_out, b_out=b_out,
                hidden_size=hidden_size, output_size=output_size)


def pack_params(params, *, tile_o=2048):
    """Pad / fuse / lay out parameters for the TPU kernel.

    * every lane dim -> multiple of 128, each gate block padded independently,
    * one (2Hp, 4Hp) fused gate weight producing [r, z, i_n, h_n] (no
      duplicated W_hh_n block),
    * vocab padded up to a multiple of the chosen tile (no tile fallback)."""
    H, O = params["hidden_size"], params["output_size"]
    Hp = _round_up(H, _LANE)
    tile_o = max(_LANE, _round_up(tile_o, _LANE))
    tile_o = min(tile_o, _round_up(O, _LANE))
    Op = _round_up(O, tile_o)                 # multiple of tile_o

    w_ih, w_hh = params["w_ih"], params["w_hh"]
    b_ih, b_hh = params["b_ih"], params["b_hh"]

    wg = jnp.zeros((2 * Hp, 4 * Hp), jnp.bfloat16)
    # x rows (0:H) feed the r, z, i_n blocks; h rows (Hp:Hp+H) feed r, z, h_n.
    wg = wg.at[:H, 0:H].set(w_ih[:, 0:H])                        # r  (x)
    wg = wg.at[:H, Hp:Hp + H].set(w_ih[:, H:2 * H])              # z  (x)
    wg = wg.at[:H, 2 * Hp:2 * Hp + H].set(w_ih[:, 2 * H:3 * H])  # i_n(x)
    wg = wg.at[Hp:Hp + H, 0:H].set(w_hh[:, 0:H])                 # r  (h)
    wg = wg.at[Hp:Hp + H, Hp:Hp + H].set(w_hh[:, H:2 * H])       # z  (h)
    wg = wg.at[Hp:Hp + H, 3 * Hp:3 * Hp + H].set(w_hh[:, 2 * H:3 * H])  # h_n(h)

    bg = jnp.zeros((1, 4 * Hp), jnp.float32)
    bg = bg.at[:, 0:H].set(b_ih[:, 0:H] + b_hh[:, 0:H])
    bg = bg.at[:, Hp:Hp + H].set(b_ih[:, H:2 * H] + b_hh[:, H:2 * H])
    bg = bg.at[:, 2 * Hp:2 * Hp + H].set(b_ih[:, 2 * H:3 * H])
    bg = bg.at[:, 3 * Hp:3 * Hp + H].set(b_hh[:, 2 * H:3 * H])

    # TODO(synk): quantize w_out (fp8 on v7x, int8 on v5e/v6e) with per-column
    # scales to halve the dominant streamed byte count of the projection.
    w_out = jnp.zeros((Hp, Op), jnp.bfloat16).at[:H, :O].set(params["w_out"])
    b_out = jnp.zeros((1, Op), jnp.float32).at[:, :O].set(params["b_out"])
    emb = jnp.zeros((O, Hp), jnp.bfloat16).at[:, :H].set(params["embedding"])

    return dict(embedding=emb, w_gates=wg, b_gates=bg, w_out=w_out,
                b_out=b_out, H=H, O=O, Hp=Hp, Op=Op, tile_o=tile_o)


# ---------------------------------------------------------------------------
# Forward pass (matches DecoderRNN.forward)
# ---------------------------------------------------------------------------
def decoder_rnn_forward(token_ids, hidden, kparams):
    """token_ids: (B,) int32; hidden: (1, B, H) f32 (PyTorch GRU layout).
    Returns (log_probs (B, O) f32, new_hidden (1, B, H) f32)."""
    H, O = kparams["H"], kparams["O"]
    Hp, Op, tile_o = kparams["Hp"], kparams["Op"], kparams["tile_o"]
    B = token_ids.shape[0]
    Bp = _round_up(max(B, 1), _SUBLANE_BF16)
    n_tiles = Op // tile_o

    # Embedding lookup (gather) + batch/lane padding — plain-JAX glue.
    # TODO(synk): fuse the gather into the kernel (scalar-prefetched token ids
    # + pl.Element row gather) to drop per-token launch overhead in decode loops.
    x = jnp.take(kparams["embedding"], token_ids, axis=0)             # (B, Hp) bf16
    x = jnp.zeros((Bp, Hp), jnp.bfloat16).at[:B].set(x)
    h0 = jnp.zeros((Bp, Hp), jnp.float32).at[:B, :H].set(hidden[0])
    xh = jnp.concatenate([x, h0.astype(jnp.bfloat16)], axis=1)        # (Bp, 2Hp)

    kernel = functools.partial(decoder_rnn_kernel, hp=Hp, o_actual=O,
                               op_total=Op, tile_o=tile_o)

    # VMEM budget: single-buffered constants + double-buffered streamed tiles.
    vmem_need = (Bp * 2 * Hp * 2 + Bp * Hp * 4                 # xh, h0
                 + 2 * Hp * 4 * Hp * 2 + 8 * 4 * Hp * 4        # gate W + bias
                 + 2 * (Hp * tile_o * 2 + 8 * tile_o * 4)      # w_out/b_out tiles
                 + 2 * Bp * tile_o * 4                         # logits out tiles
                 + Bp * _LANE * 4 + Bp * Hp * 4                # lse + h_new outs
                 + 2 * Bp * _LANE * 4 + Bp * Hp * 2)           # m/l + bf16 scratch
    vmem_limit = int(min(max(2 * vmem_need, 32 * 1024 * 1024),
                         60 * 1024 * 1024))

    cost = pl.CostEstimate(
        flops=2 * Bp * (2 * Hp) * (4 * Hp) + 2 * Bp * Hp * Op,
        transcendentals=Bp * (3 * Hp + Op),
        bytes_accessed=(Bp * 2 * Hp * 2 + Bp * Hp * 4
                        + 2 * Hp * 4 * Hp * 2 + 4 * Hp * 4
                        + Hp * Op * 2 + Op * 4
                        + Bp * Op * 4 + Bp * 4 + Bp * Hp * 4))

    out_shape = (jax.ShapeDtypeStruct((Bp, Op), jnp.float32),   # raw logits
                 jax.ShapeDtypeStruct((Bp, 1), jnp.float32),    # log-sum-exp
                 jax.ShapeDtypeStruct((Bp, Hp), jnp.float32))   # new hidden

    def _call(single_buffer_constants):
        def const_spec(shape):
            if single_buffer_constants:
                return pl.BlockSpec(shape, lambda j: (0, 0),
                                    pipeline_mode=pl.Buffered(1))
            return pl.BlockSpec(shape, lambda j: (0, 0))

        grid_spec = pltpu.PrefetchScalarGridSpec(
            num_scalar_prefetch=0,
            grid=(n_tiles,),
            in_specs=[
                const_spec((Bp, 2 * Hp)),                        # [x | h] bf16
                const_spec((Bp, Hp)),                            # h (f32)
                const_spec((2 * Hp, 4 * Hp)),                    # fused gate W
                const_spec((1, 4 * Hp)),                         # fused gate b
                pl.BlockSpec((Hp, tile_o), lambda j: (0, j)),    # w_out tile
                pl.BlockSpec((1, tile_o), lambda j: (0, j)),     # b_out tile
            ],
            out_specs=(
                pl.BlockSpec((Bp, tile_o), lambda j: (0, j)),    # logits tile
                pl.BlockSpec((Bp, 1), lambda j: (0, 0)),         # lse
                pl.BlockSpec((Bp, Hp), lambda j: (0, 0)),        # new hidden
            ),
            scratch_shapes=[
                pltpu.VMEM((Bp, 1), jnp.float32),                # running max
                pltpu.VMEM((Bp, 1), jnp.float32),                # running sumexp
                pltpu.VMEM((Bp, Hp), jnp.bfloat16),              # h_new in bf16
            ],
        )
        return pl.pallas_call(
            kernel,
            out_shape=out_shape,
            grid_spec=grid_spec,
            input_output_aliases={1: 2},     # h0 buffer reused for new hidden
            cost_estimate=cost,
            compiler_params=pltpu.CompilerParams(
                # TODO(synk): on v7x, split vocab tiles across both TensorCores
                # (parallel axis + per-core partial (m, l) combined outside).
                dimension_semantics=("arbitrary",),
                vmem_limit_bytes=vmem_limit),
        )(xh, h0, kparams["w_gates"], kparams["b_gates"],
          kparams["w_out"], kparams["b_out"])

    try:
        logits_p, lse_p, h_new_p = _call(True)
    except Exception:
        # pl.Buffered(1) not honoured on this JAX/libtpu -> default buffering.
        logits_p, lse_p, h_new_p = _call(False)

    log_probs = logits_p[:B, :O] - lse_p[:B]
    return log_probs, h_new_p[None, :B, :H]


# ---------------------------------------------------------------------------
# Pure-JAX reference mirroring PyTorch GRU/Linear/LogSoftmax semantics
# (same bf16 matmul operands / f32 accumulation as the kernel).
# ---------------------------------------------------------------------------
def reference_forward(token_ids, hidden, params):
    H = params["hidden_size"]
    x = jnp.take(params["embedding"], token_ids, axis=0)             # bf16
    h = hidden[0]                                                    # f32
    gi = jnp.dot(x, params["w_ih"],
                 preferred_element_type=jnp.float32) + params["b_ih"]
    gh = jnp.dot(h.astype(jnp.bfloat16), params["w_hh"],
                 preferred_element_type=jnp.float32) + params["b_hh"]
    i_r, i_z, i_n = gi[:, :H], gi[:, H:2 * H], gi[:, 2 * H:]
    h_r, h_z, h_n = gh[:, :H], gh[:, H:2 * H], gh[:, 2 * H:]
    r = jax.nn.sigmoid(i_r + h_r)
    z = jax.nn.sigmoid(i_z + h_z)
    n = jnp.tanh(i_n + r * h_n)
    h_new = (1.0 - z) * n + z * h
    logits = jnp.dot(h_new.astype(jnp.bfloat16), params["w_out"],
                     preferred_element_type=jnp.float32) + params["b_out"]
    return jax.nn.log_softmax(logits, axis=-1), h_new[None]


if __name__ == "__main__":
    batch = 2
    hidden_size = 32        # padded to 128 lanes inside the kernel
    output_size = 160       # padded to 256 vocab columns

    key = jax.random.PRNGKey(0)
    k_param, k_tok, k_hid = jax.random.split(key, 3)

    params = init_params(k_param, hidden_size, output_size)
    token_ids = jax.random.randint(k_tok, (batch,), 0, output_size,
                                   dtype=jnp.int32)
    hidden = jax.random.normal(k_hid, (1, batch, hidden_size), jnp.float32)

    ref_lp, ref_h = reference_forward(token_ids, hidden, params)

    # Default (large, auto-clamped) tile -> single vocab tile; explicit 128
    # tile -> exercises the multi-tile online-LSE / last-tile masking path.
    for tile in (2048, 128):
        kparams = pack_params(params, tile_o=tile)
        log_probs, new_hidden = decoder_rnn_forward(token_ids, hidden, kparams)
        jax.block_until_ready((log_probs, new_hidden))

        assert log_probs.shape == (batch, output_size)
        assert new_hidden.shape == (1, batch, hidden_size)
        # h_new: f32 accumulation, only summation-order differences.
        assert jnp.allclose(new_hidden, ref_h, atol=1e-4, rtol=1e-4), \
            float(jnp.max(jnp.abs(new_hidden - ref_h)))
        # log-probs: bf16 matmul operands (f32 accumulation) in both paths.
        assert jnp.allclose(log_probs, ref_lp, atol=3e-3, rtol=3e-3), \
            float(jnp.max(jnp.abs(log_probs - ref_lp)))
        # log-softmax rows must exponentiate-sum to 1.
        assert jnp.allclose(jnp.sum(jnp.exp(log_probs), axis=-1), 1.0, atol=1e-4)

    print("KERNEL_OK")
</pallas_src>

<mosaic_0001>
module attributes {stable_mosaic.version = 11 : i64} {
  func.func @decoder_rnn_kernel(%arg0: i32, %arg1: memref<16x256xbf16, #tpu.memory_space<vmem>>, %arg2: memref<16x128xf32, #tpu.memory_space<vmem>>, %arg3: memref<256x512xbf16, #tpu.memory_space<vmem>>, %arg4: memref<1x512xf32, #tpu.memory_space<vmem>>, %arg5: memref<128x256xbf16, #tpu.memory_space<vmem>>, %arg6: memref<1x256xf32, #tpu.memory_space<vmem>>, %arg7: memref<16x256xf32, #tpu.memory_space<vmem>>, %arg8: memref<16x1xf32, #tpu.memory_space<vmem>>, %arg9: memref<16x128xf32, #tpu.memory_space<vmem>>, %arg10: memref<16x1xf32, #tpu.memory_space<vmem>>, %arg11: memref<16x1xf32, #tpu.memory_space<vmem>>, %arg12: memref<16x128xbf16, #tpu.memory_space<vmem>>) attributes {dimension_semantics = [#tpu.dimension_semantics<arbitrary>], iteration_bounds = array<i64: 1>, scalar_prefetch = 0 : i64, scratch_operands = 3 : i64, tpu.core_type = #tpu.core_type<tc>, window_params = [{pipeline_mode = #tpu.pipeline_mode<synchronous>, transform_indices = @transform_0, window_bounds = array<i64: 16, 256>}, {pipeline_mode = #tpu.pipeline_mode<synchronous>, transform_indices = @transform_1, window_bounds = array<i64: 16, 128>}, {pipeline_mode = #tpu.pipeline_mode<synchronous>, transform_indices = @transform_2, window_bounds = array<i64: 256, 512>}, {pipeline_mode = #tpu.pipeline_mode<synchronous>, transform_indices = @transform_3, window_bounds = array<i64: 1, 512>}, {transform_indices = @transform_4, window_bounds = array<i64: 128, 256>}, {transform_indices = @transform_5, window_bounds = array<i64: 1, 256>}, {transform_indices = @transform_6, window_bounds = array<i64: 16, 256>}, {pipeline_mode = #tpu.pipeline_mode<synchronous>, transform_indices = @transform_7, window_bounds = array<i64: 16, 1>}, {pipeline_mode = #tpu.pipeline_mode<synchronous>, transform_indices = @transform_8, window_bounds = array<i64: 16, 128>}]} {
    %c0_i32 = arith.constant 0 : i32
    %0 = arith.cmpi eq, %arg0, %c0_i32 : i32
    %1 = arith.extui %0 : i1 to i32
    %c0_i32_0 = arith.constant 0 : i32
    %2 = arith.cmpi ne, %1, %c0_i32_0 : i32
    scf.if %2 {
      %c0_14 = arith.constant 0 : index
      %c0_15 = arith.constant 0 : index
      %19 = vector.load %arg1[%c0_14, %c0_15] : memref<16x256xbf16, #tpu.memory_space<vmem>>, vector<16x256xbf16>
      %c0_16 = arith.constant 0 : index
      %c0_17 = arith.constant 0 : index
      %20 = vector.load %arg2[%c0_16, %c0_17] : memref<16x128xf32, #tpu.memory_space<vmem>>, vector<16x128xf32>
      %c0_18 = arith.constant 0 : index
      %c0_19 = arith.constant 0 : index
      %21 = vector.load %arg3[%c0_18, %c0_19] : memref<256x512xbf16, #tpu.memory_space<vmem>>, vector<256x512xbf16>
      %cst_20 = arith.constant dense<0.000000e+00> : vector<16x512xf32>
      %22 = tpu.matmul %19, %21, %cst_20 {dimension_numbers = #tpu.dot_dimension_numbers<[1], [0], [0], [1], [0, 0, 1, 1], [], []>} : vector<16x256xbf16>, vector<256x512xbf16>, vector<16x512xf32> -> vector<16x512xf32>
      %c0_21 = arith.constant 0 : index
      %c0_22 = arith.constant 0 : index
      %23 = vector.load %arg4[%c0_21, %c0_22] : memref<1x512xf32, #tpu.memory_space<vmem>>, vector<1x512xf32>
      %24 = vector.broadcast %23 : vector<1x512xf32> to vector<16x512xf32>
      %25 = arith.addf %22, %24 : vector<16x512xf32>
      %26 = vector.extract_strided_slice %25 {offsets = [0, 0], sizes = [16, 128], strides = [1, 1]} : vector<16x512xf32> to vector<16x128xf32>
      %27 = arith.negf %26 : vector<16x128xf32>
      %28 = math.exp %27 : vector<16x128xf32>
      %cst_23 = arith.constant 1.000000e+00 : f32
      %29 = vector.broadcast %cst_23 : f32 to vector<16x128xf32>
      %30 = arith.addf %29, %28 : vector<16x128xf32>
      %31 = arith.divf %29, %30 : vector<16x128xf32>
      %32 = vector.extract_strided_slice %25 {offsets = [0, 128], sizes = [16, 128], strides = [1, 1]} : vector<16x512xf32> to vector<16x128xf32>
      %33 = arith.negf %32 : vector<16x128xf32>
      %34 = math.exp %33 : vector<16x128xf32>
      %cst_24 = arith.constant 1.000000e+00 : f32
      %35 = vector.broadcast %cst_24 : f32 to vector<16x128xf32>
      %36 = arith.addf %35, %34 : vector<16x128xf32>
      %37 = arith.divf %35, %36 : vector<16x128xf32>
      %38 = vector.extract_strided_slice %25 {offsets = [0, 256], sizes = [16, 128], strides = [1, 1]} : vector<16x512xf32> to vector<16x128xf32>
      %39 = vector.extract_strided_slice %25 {offsets = [0, 384], sizes = [16, 128], strides = [1, 1]} : vector<16x512xf32> to vector<16x128xf32>
      %40 = arith.mulf %31, %39 : vector<16x128xf32>
      %41 = arith.addf %38, %40 : vector<16x128xf32>
      %42 = math.tanh %41 : vector<16x128xf32>
      %cst_25 = arith.constant 1.000000e+00 : f32
      %43 = vector.broadcast %cst_25 : f32 to vector<16x128xf32>
      %44 = arith.subf %43, %37 : vector<16x128xf32>
      %45 = arith.mulf %44, %42 : vector<16x128xf32>
      %46 = arith.mulf %37, %20 : vector<16x128xf32>
      %47 = arith.addf %45, %46 : vector<16x128xf32>
      %c0_26 = arith.constant 0 : index
      %c0_27 = arith.constant 0 : index
      %48 = vector.load %arg9[%c0_26, %c0_27] : memref<16x128xf32, #tpu.memory_space<vmem>>, vector<16x128xf32>
      tpu.vector_store %arg9[%c0_26, %c0_27], %47 {strides = array<i32>} : memref<16x128xf32, #tpu.memory_space<vmem>>, vector<16x128xf32>,
      %49 = arith.truncf %47 : vector<16x128xf32> to vector<16x128xbf16>
      %c0_28 = arith.constant 0 : index
      %c0_29 = arith.constant 0 : index
      %50 = vector.load %arg12[%c0_28, %c0_29] : memref<16x128xbf16, #tpu.memory_space<vmem>>, vector<16x128xbf16>
      tpu.vector_store %arg12[%c0_28, %c0_29], %49 {strides = array<i32>} : memref<16x128xbf16, #tpu.memory_space<vmem>>, vector<16x128xbf16>,
      %cst_30 = arith.constant -1.000000e+30 : f32
      %51 = vector.broadcast %cst_30 : f32 to vector<16x1xf32>
      %c0_31 = arith.constant 0 : index
      %c0_32 = arith.constant 0 : index
      %52 = vector.load %arg10[%c0_31, %c0_32] : memref<16x1xf32, #tpu.memory_space<vmem>>, vector<16x1xf32>
      tpu.vector_store %arg10[%c0_31, %c0_32], %51 {strides = array<i32>} : memref<16x1xf32, #tpu.memory_space<vmem>>, vector<16x1xf32>,
      %cst_33 = arith.constant 0.000000e+00 : f32
      %53 = vector.broadcast %cst_33 : f32 to vector<16x1xf32>
      %c0_34 = arith.constant 0 : index
      %c0_35 = arith.constant 0 : index
      %54 = vector.load %arg11[%c0_34, %c0_35] : memref<16x1xf32, #tpu.memory_space<vmem>>, vector<16x1xf32>
      tpu.vector_store %arg11[%c0_34, %c0_35], %53 {strides = array<i32>} : memref<16x1xf32, #tpu.memory_space<vmem>>, vector<16x1xf32>,
    } else {
    }
    %c0 = arith.constant 0 : index
    %c0_1 = arith.constant 0 : index
    %3 = vector.load %arg12[%c0, %c0_1] : memref<16x128xbf16, #tpu.memory_space<vmem>>, vector<16x128xbf16>
    %c0_2 = arith.constant 0 : index
    %c0_3 = arith.constant 0 : index
    %4 = vector.load %arg5[%c0_2, %c0_3] : memref<128x256xbf16, #tpu.memory_space<vmem>>, vector<128x256xbf16>
    %cst = arith.constant dense<0.000000e+00> : vector<16x256xf32>
    %5 = tpu.matmul %3, %4, %cst {dimension_numbers = #tpu.dot_dimension_numbers<[1], [0], [0], [1], [0, 0, 1, 1], [], []>} : vector<16x128xbf16>, vector<128x256xbf16>, vector<16x256xf32> -> vector<16x256xf32>
    %c0_4 = arith.constant 0 : index
    %c0_5 = arith.constant 0 : index
    %6 = vector.load %arg6[%c0_4, %c0_5] : memref<1x256xf32, #tpu.memory_space<vmem>>, vector<1x256xf32>
    %7 = vector.broadcast %6 : vector<1x256xf32> to vector<16x256xf32>
    %8 = arith.addf %5, %7 : vector<16x256xf32>
    %c0_6 = arith.constant 0 : index
    %c0_7 = arith.constant 0 : index
    %9 = vector.load %arg7[%c0_6, %c0_7] : memref<16x256xf32, #tpu.memory_space<vmem>>, vector<16x256xf32>
    tpu.vector_store %arg7[%c0_6, %c0_7], %8 {strides = array<i32>} : memref<16x256xf32, #tpu.memory_space<vmem>>, vector<16x256xf32>,
    %c0_i32_8 = arith.constant 0 : i32
    %10 = arith.cmpi ne, %arg0, %c0_i32_8 : i32
    %11 = arith.extui %10 : i1 to i32
    %c0_i32_9 = arith.constant 0 : i32
    %12 = arith.cmpi ne, %11, %c0_i32_9 : i32
    scf.if %12 {
      %c0_14 = arith.constant 0 : index
      %c0_15 = arith.constant 0 : index
      %19 = vector.load %arg10[%c0_14, %c0_15] : memref<16x1xf32, #tpu.memory_space<vmem>>, vector<16x1xf32>
      %cst_16 = arith.constant dense<0xFF800000> : vector<16xf32>
      %20 = vector.multi_reduction <maximumf>, %8, %cst_16 [1] : vector<16x256xf32> to vector<16xf32>
      %21 = vector.shape_cast %20 : vector<16xf32> to vector<16x1xf32>
      %22 = arith.maximumf %19, %21 : vector<16x1xf32>
      %c0_17 = arith.constant 0 : index
      %c0_18 = arith.constant 0 : index
      %23 = vector.load %arg11[%c0_17, %c0_18] : memref<16x1xf32, #tpu.memory_space<vmem>>, vector<16x1xf32>
      %24 = arith.subf %19, %22 : vector<16x1xf32>
      %25 = math.exp %24 : vector<16x1xf32>
      %26 = arith.mulf %23, %25 : vector<16x1xf32>
      %27 = vector.broadcast %22 : vector<16x1xf32> to vector<16x256xf32>
      %28 = arith.subf %8, %27 : vector<16x256xf32>
      %29 = math.exp %28 : vector<16x256xf32>
      %cst_19 = arith.constant dense<0.000000e+00> : vector<16xf32>
      %30 = vector.multi_reduction <add>, %29, %cst_19 [1] : vector<16x256xf32> to vector<16xf32>
      %31 = vector.shape_cast %30 : vector<16xf32> to vector<16x1xf32>
      %32 = arith.addf %26, %31 : vector<16x1xf32>
      %c0_20 = arith.constant 0 : index
      %c0_21 = arith.constant 0 : index
      %33 = vector.load %arg11[%c0_20, %c0_21] : memref<16x1xf32, #tpu.memory_space<vmem>>, vector<16x1xf32>
      tpu.vector_store %arg11[%c0_20, %c0_21], %32 {strides = array<i32>} : memref<16x1xf32, #tpu.memory_space<vmem>>, vector<16x1xf32>,
      %c0_22 = arith.constant 0 : index
      %c0_23 = arith.constant 0 : index
      %34 = vector.load %arg10[%c0_22, %c0_23] : memref<16x1xf32, #tpu.memory_space<vmem>>, vector<16x1xf32>
      tpu.vector_store %arg10[%c0_22, %c0_23], %22 {strides = array<i32>} : memref<16x1xf32, #tpu.memory_space<vmem>>, vector<16x1xf32>,
    } else {
    }
    %c0_i32_10 = arith.constant 0 : i32
    %13 = arith.cmpi eq, %arg0, %c0_i32_10 : i32
    %14 = arith.extui %13 : i1 to i32
    %c0_i32_11 = arith.constant 0 : i32
    %15 = arith.cmpi ne, %14, %c0_i32_11 : i32
    scf.if %15 {
      %19 = tpu.iota {dimensions = array<i32: 1>} : vector<16x256xi32>
      %c256_i32 = arith.constant 256 : i32
      %20 = arith.muli %arg0, %c256_i32 : i32
      %21 = vector.broadcast %20 : i32 to vector<16x256xi32>
      %22 = arith.addi %19, %21 : vector<16x256xi32>
      %c160_i32 = arith.constant 160 : i32
      %23 = vector.broadcast %c160_i32 : i32 to vector<16x256xi32>
      %24 = arith.cmpi slt, %22, %23 : vector<16x256xi32>
      %cst_14 = arith.constant -1.000000e+30 : f32
      %25 = vector.broadcast %cst_14 : f32 to vector<16x256xf32>
      %26 = arith.select %24, %8, %25 : vector<16x256xi1>, vector<16x256xf32>
      %c0_15 = arith.constant 0 : index
      %c0_16 = arith.constant 0 : index
      %27 = vector.load %arg10[%c0_15, %c0_16] : memref<16x1xf32, #tpu.memory_space<vmem>>, vector<16x1xf32>
      %cst_17 = arith.constant dense<0xFF800000> : vector<16xf32>
      %28 = vector.multi_reduction <maximumf>, %26, %cst_17 [1] : vector<16x256xf32> to vector<16xf32>
      %29 = vector.shape_cast %28 : vector<16xf32> to vector<16x1xf32>
      %30 = arith.maximumf %27, %29 : vector<16x1xf32>
      %c0_18 = arith.constant 0 : index
      %c0_19 = arith.constant 0 : index
      %31 = vector.load %arg11[%c0_18, %c0_19] : memref<16x1xf32, #tpu.memory_space<vmem>>, vector<16x1xf32>
      %32 = arith.subf %27, %30 : vector<16x1xf32>
      %33 = math.exp %32 : vector<16x1xf32>
      %34 = arith.mulf %31, %33 : vector<16x1xf32>
      %35 = vector.broadcast %30 : vector<16x1xf32> to vector<16x256xf32>
      %36 = arith.subf %26, %35 : vector<16x256xf32>
      %37 = math.exp %36 : vector<16x256xf32>
      %cst_20 = arith.constant dense<0.000000e+00> : vector<16xf32>
      %38 = vector.multi_reduction <add>, %37, %cst_20 [1] : vector<16x256xf32> to vector<16xf32>
      %39 = vector.shape_cast %38 : vector<16xf32> to vector<16x1xf32>
      %40 = arith.addf %34, %39 : vector<16x1xf32>
      %c0_21 = arith.constant 0 : index
      %c0_22 = arith.constant 0 : index
      %41 = vector.load %arg11[%c0_21, %c0_22] : memref<16x1xf32, #tpu.memory_space<vmem>>, vector<16x1xf32>
      tpu.vector_store %arg11[%c0_21, %c0_22], %40 {strides = array<i32>} : memref<16x1xf32, #tpu.memory_space<vmem>>, vector<16x1xf32>,
      %c0_23 = arith.constant 0 : index
      %c0_24 = arith.constant 0 : index
      %42 = vector.load %arg10[%c0_23, %c0_24] : memref<16x1xf32, #tpu.memory_space<vmem>>, vector<16x1xf32>
      tpu.vector_store %arg10[%c0_23, %c0_24], %30 {strides = array<i32>} : memref<16x1xf32, #tpu.memory_space<vmem>>, vector<16x1xf32>,
    } else {
    }
    %c0_i32_12 = arith.constant 0 : i32
    %16 = arith.cmpi eq, %arg0, %c0_i32_12 : i32
    %17 = arith.extui %16 : i1 to i32
    %c0_i32_13 = arith.constant 0 : i32
    %18 = arith.cmpi ne, %17, %c0_i32_13 : i32
    scf.if %18 {
      %c0_14 = arith.constant 0 : index
      %c0_15 = arith.constant 0 : index
      %19 = vector.load %arg10[%c0_14, %c0_15] : memref<16x1xf32, #tpu.memory_space<vmem>>, vector<16x1xf32>
      %c0_16 = arith.constant 0 : index
      %c0_17 = arith.constant 0 : index
      %20 = vector.load %arg11[%c0_16, %c0_17] : memref<16x1xf32, #tpu.memory_space<vmem>>, vector<16x1xf32>
      %21 = math.log %20 : vector<16x1xf32>
      %22 = arith.addf %19, %21 : vector<16x1xf32>
      %c0_18 = arith.constant 0 : index
      %c0_19 = arith.constant 0 : index
      %23 = vector.load %arg8[%c0_18, %c0_19] : memref<16x1xf32, #tpu.memory_space<vmem>>, vector<16x1xf32>
      tpu.vector_store %arg8[%c0_18, %c0_19], %22 {strides = array<i32>} : memref<16x1xf32, #tpu.memory_space<vmem>>, vector<16x1xf32>,
    } else {
    }
    return
  }
  func.func @transform_0(%arg0: i32) -> (i32, i32) {
    %c0_i32 = arith.constant 0 : i32
    %c0_i32_0 = arith.constant 0 : i32
    %c0_i32_1 = arith.constant 0 : i32
    return %c0_i32, %c0_i32_0 : i32, i32
  }
  func.func @transform_1(%arg0: i32) -> (i32, i32) {
    %c0_i32 = arith.constant 0 : i32
    %c0_i32_0 = arith.constant 0 : i32
    %c0_i32_1 = arith.constant 0 : i32
    return %c0_i32, %c0_i32_0 : i32, i32
  }
  func.func @transform_2(%arg0: i32) -> (i32, i32) {
    %c0_i32 = arith.constant 0 : i32
    %c0_i32_0 = arith.constant 0 : i32
    %c0_i32_1 = arith.constant 0 : i32
    return %c0_i32, %c0_i32_0 : i32, i32
  }
  func.func @transform_3(%arg0: i32) -> (i32, i32) {
    %c0_i32 = arith.constant 0 : i32
    %c0_i32_0 = arith.constant 0 : i32
    %c0_i32_1 = arith.constant 0 : i32
    return %c0_i32, %c0_i32_0 : i32, i32
  }
  func.func @transform_4(%arg0: i32) -> (i32, i32) {
    %c0_i32 = arith.constant 0 : i32
    %c0_i32_0 = arith.constant 0 : i32
    return %c0_i32, %arg0 : i32, i32
  }
  func.func @transform_5(%arg0: i32) -> (i32, i32) {
    %c0_i32 = arith.constant 0 : i32
    %c0_i32_0 = arith.constant 0 : i32
    return %c0_i32, %arg0 : i32, i32
  }
  func.func @transform_6(%arg0: i32) -> (i32, i32) {
    %c0_i32 = arith.constant 0 : i32
    %c0_i32_0 = arith.constant 0 : i32
    return %c0_i32, %arg0 : i32, i32
  }
  func.func @transform_7(%arg0: i32) -> (i32, i32) {
    %c0_i32 = arith.constant 0 : i32
    %c0_i32_0 = arith.constant 0 : i32
    %c0_i32_1 = arith.constant 0 : i32
    return %c0_i32, %c0_i32_0 : i32, i32
  }
  func.func @transform_8(%arg0: i32) -> (i32, i32) {
    %c0_i32 = arith.constant 0 : i32
    %c0_i32_0 = arith.constant 0 : i32
    %c0_i32_1 = arith.constant 0 : i32
    return %c0_i32, %c0_i32_0 : i32, i32
  }
}

module attributes {stable_mosaic.version = 11 : i64} {
  func.func @decoder_rnn_kernel(%arg0: i32, %arg1: memref<16x256xbf16, #tpu.memory_space<vmem>>, %arg2: memref<16x128xf32, #tpu.memory_space<vmem>>, %arg3: memref<256x512xbf16, #tpu.memory_space<vmem>>, %arg4: memref<1x512xf32, #tpu.memory_space<vmem>>, %arg5: memref<128x256xbf16, #tpu.memory_space<vmem>>, %arg6: memref<1x256xf32, #tpu.memory_space<vmem>>, %arg7: memref<16x256xf32, #tpu.memory_space<vmem>>, %arg8: memref<16x1xf32, #tpu.memory_space<vmem>>, %arg9: memref<16x128xf32, #tpu.memory_space<vmem>>, %arg10: memref<16x1xf32, #tpu.memory_space<vmem>>, %arg11: memref<16x1xf32, #tpu.memory_space<vmem>>, %arg12: memref<16x128xbf16, #tpu.memory_space<vmem>>) attributes {dimension_semantics = [#tpu.dimension_semantics<arbitrary>], iteration_bounds = array<i64: 1>, scalar_prefetch = 0 : i64, scratch_operands = 3 : i64, tpu.core_type = #tpu.core_type<tc>, window_params = [{pipeline_mode = #tpu.pipeline_mode<synchronous>, transform_indices = @transform_0, window_bounds = array<i64: 16, 256>}, {pipeline_mode = #tpu.pipeline_mode<synchronous>, transform_indices = @transform_1, window_bounds = array<i64: 16, 128>}, {pipeline_mode = #tpu.pipeline_mode<synchronous>, transform_indices = @transform_2, window_bounds = array<i64: 256, 512>}, {pipeline_mode = #tpu.pipeline_mode<synchronous>, transform_indices = @transform_3, window_bounds = array<i64: 1, 512>}, {transform_indices = @transform_4, window_bounds = array<i64: 128, 256>}, {transform_indices = @transform_5, window_bounds = array<i64: 1, 256>}, {transform_indices = @transform_6, window_bounds = array<i64: 16, 256>}, {pipeline_mode = #tpu.pipeline_mode<synchronous>, transform_indices = @transform_7, window_bounds = array<i64: 16, 1>}, {pipeline_mode = #tpu.pipeline_mode<synchronous>, transform_indices = @transform_8, window_bounds = array<i64: 16, 128>}]} {
    %c0_i32 = arith.constant 0 : i32
    %0 = arith.cmpi eq, %arg0, %c0_i32 : i32
    %1 = arith.extui %0 : i1 to i32
    %c0_i32_0 = arith.constant 0 : i32
    %2 = arith.cmpi ne, %1, %c0_i32_0 : i32
    scf.if %2 {
      %c0_14 = arith.constant 0 : index
      %c0_15 = arith.constant 0 : index
      %19 = vector.load %arg1[%c0_14, %c0_15] : memref<16x256xbf16, #tpu.memory_space<vmem>>, vector<16x256xbf16>
      %c0_16 = arith.constant 0 : index
      %c0_17 = arith.constant 0 : index
      %20 = vector.load %arg2[%c0_16, %c0_17] : memref<16x128xf32, #tpu.memory_space<vmem>>, vector<16x128xf32>
      %c0_18 = arith.constant 0 : index
      %c0_19 = arith.constant 0 : index
      %21 = vector.load %arg3[%c0_18, %c0_19] : memref<256x512xbf16, #tpu.memory_space<vmem>>, vector<256x512xbf16>
      %cst_20 = arith.constant dense<0.000000e+00> : vector<16x512xf32>
      %22 = tpu.matmul %19, %21, %cst_20 {dimension_numbers = #tpu.dot_dimension_numbers<[1], [0], [0], [1], [0, 0, 1, 1], [], []>} : vector<16x256xbf16>, vector<256x512xbf16>, vector<16x512xf32> -> vector<16x512xf32>
      %c0_21 = arith.constant 0 : index
      %c0_22 = arith.constant 0 : index
      %23 = vector.load %arg4[%c0_21, %c0_22] : memref<1x512xf32, #tpu.memory_space<vmem>>, vector<1x512xf32>
      %24 = vector.broadcast %23 : vector<1x512xf32> to vector<16x512xf32>
      %25 = arith.addf %22, %24 : vector<16x512xf32>
      %26 = vector.extract_strided_slice %25 {offsets = [0, 0], sizes = [16, 128], strides = [1, 1]} : vector<16x512xf32> to vector<16x128xf32>
      %27 = arith.negf %26 : vector<16x128xf32>
      %28 = math.exp %27 : vector<16x128xf32>
      %cst_23 = arith.constant 1.000000e+00 : f32
      %29 = vector.broadcast %cst_23 : f32 to vector<16x128xf32>
      %30 = arith.addf %29, %28 : vector<16x128xf32>
      %31 = arith.divf %29, %30 : vector<16x128xf32>
      %32 = vector.extract_strided_slice %25 {offsets = [0, 128], sizes = [16, 128], strides = [1, 1]} : vector<16x512xf32> to vector<16x128xf32>
      %33 = arith.negf %32 : vector<16x128xf32>
      %34 = math.exp %33 : vector<16x128xf32>
      %cst_24 = arith.constant 1.000000e+00 : f32
      %35 = vector.broadcast %cst_24 : f32 to vector<16x128xf32>
      %36 = arith.addf %35, %34 : vector<16x128xf32>
      %37 = arith.divf %35, %36 : vector<16x128xf32>
      %38 = vector.extract_strided_slice %25 {offsets = [0, 256], sizes = [16, 128], strides = [1, 1]} : vector<16x512xf32> to vector<16x128xf32>
      %39 = vector.extract_strided_slice %25 {offsets = [0, 384], sizes = [16, 128], strides = [1, 1]} : vector<16x512xf32> to vector<16x128xf32>
      %40 = arith.mulf %31, %39 : vector<16x128xf32>
      %41 = arith.addf %38, %40 : vector<16x128xf32>
      %42 = math.tanh %41 : vector<16x128xf32>
      %cst_25 = arith.constant 1.000000e+00 : f32
      %43 = vector.broadcast %cst_25 : f32 to vector<16x128xf32>
      %44 = arith.subf %43, %37 : vector<16x128xf32>
      %45 = arith.mulf %44, %42 : vector<16x128xf32>
      %46 = arith.mulf %37, %20 : vector<16x128xf32>
      %47 = arith.addf %45, %46 : vector<16x128xf32>
      %c0_26 = arith.constant 0 : index
      %c0_27 = arith.constant 0 : index
      %48 = vector.load %arg9[%c0_26, %c0_27] : memref<16x128xf32, #tpu.memory_space<vmem>>, vector<16x128xf32>
      tpu.vector_store %arg9[%c0_26, %c0_27], %47 {strides = array<i32>} : memref<16x128xf32, #tpu.memory_space<vmem>>, vector<16x128xf32>,
      %49 = arith.truncf %47 : vector<16x128xf32> to vector<16x128xbf16>
      %c0_28 = arith.constant 0 : index
      %c0_29 = arith.constant 0 : index
      %50 = vector.load %arg12[%c0_28, %c0_29] : memref<16x128xbf16, #tpu.memory_space<vmem>>, vector<16x128xbf16>
      tpu.vector_store %arg12[%c0_28, %c0_29], %49 {strides = array<i32>} : memref<16x128xbf16, #tpu.memory_space<vmem>>, vector<16x128xbf16>,
      %cst_30 = arith.constant -1.000000e+30 : f32
      %51 = vector.broadcast %cst_30 : f32 to vector<16x1xf32>
      %c0_31 = arith.constant 0 : index
      %c0_32 = arith.constant 0 : index
      %52 = vector.load %arg10[%c0_31, %c0_32] : memref<16x1xf32, #tpu.memory_space<vmem>>, vector<16x1xf32>
      tpu.vector_store %arg10[%c0_31, %c0_32], %51 {strides = array<i32>} : memref<16x1xf32, #tpu.memory_space<vmem>>, vector<16x1xf32>,
      %cst_33 = arith.constant 0.000000e+00 : f32
      %53 = vector.broadcast %cst_33 : f32 to vector<16x1xf32>
      %c0_34 = arith.constant 0 : index
      %c0_35 = arith.constant 0 : index
      %54 = vector.load %arg11[%c0_34, %c0_35] : memref<16x1xf32, #tpu.memory_space<vmem>>, vector<16x1xf32>
      tpu.vector_store %arg11[%c0_34, %c0_35], %53 {strides = array<i32>} : memref<16x1xf32, #tpu.memory_space<vmem>>, vector<16x1xf32>,
    } else {
    }
    %c0 = arith.constant 0 : index
    %c0_1 = arith.constant 0 : index
    %3 = vector.load %arg12[%c0, %c0_1] : memref<16x128xbf16, #tpu.memory_space<vmem>>, vector<16x128xbf16>
    %c0_2 = arith.constant 0 : index
    %c0_3 = arith.constant 0 : index
    %4 = vector.load %arg5[%c0_2, %c0_3] : memref<128x256xbf16, #tpu.memory_space<vmem>>, vector<128x256xbf16>
    %cst = arith.constant dense<0.000000e+00> : vector<16x256xf32>
    %5 = tpu.matmul %3, %4, %cst {dimension_numbers = #tpu.dot_dimension_numbers<[1], [0], [0], [1], [0, 0, 1, 1], [], []>} : vector<16x128xbf16>, vector<128x256xbf16>, vector<16x256xf32> -> vector<16x256xf32>
    %c0_4 = arith.constant 0 : index
    %c0_5 = arith.constant 0 : index
    %6 = vector.load %arg6[%c0_4, %c0_5] : memref<1x256xf32, #tpu.memory_space<vmem>>, vector<1x256xf32>
    %7 = vector.broadcast %6 : vector<1x256xf32> to vector<16x256xf32>
    %8 = arith.addf %5, %7 : vector<16x256xf32>
    %c0_6 = arith.constant 0 : index
    %c0_7 = arith.constant 0 : index
    %9 = vector.load %arg7[%c0_6, %c0_7] : memref<16x256xf32, #tpu.memory_space<vmem>>, vector<16x256xf32>
    tpu.vector_store %arg7[%c0_6, %c0_7], %8 {strides = array<i32>} : memref<16x256xf32, #tpu.memory_space<vmem>>, vector<16x256xf32>,
    %c0_i32_8 = arith.constant 0 : i32
    %10 = arith.cmpi ne, %arg0, %c0_i32_8 : i32
    %11 = arith.extui %10 : i1 to i32
    %c0_i32_9 = arith.constant 0 : i32
    %12 = arith.cmpi ne, %11, %c0_i32_9 : i32
    scf.if %12 {
      %c0_14 = arith.constant 0 : index
      %c0_15 = arith.constant 0 : index
      %19 = vector.load %arg10[%c0_14, %c0_15] : memref<16x1xf32, #tpu.memory_space<vmem>>, vector<16x1xf32>
      %cst_16 = arith.constant dense<0xFF800000> : vector<16xf32>
      %20 = vector.multi_reduction <maximumf>, %8, %cst_16 [1] : vector<16x256xf32> to vector<16xf32>
      %21 = vector.shape_cast %20 : vector<16xf32> to vector<16x1xf32>
      %22 = arith.maximumf %19, %21 : vector<16x1xf32>
      %c0_17 = arith.constant 0 : index
      %c0_18 = arith.constant 0 : index
      %23 = vector.load %arg11[%c0_17, %c0_18] : memref<16x1xf32, #tpu.memory_space<vmem>>, vector<16x1xf32>
      %24 = arith.subf %19, %22 : vector<16x1xf32>
      %25 = math.exp %24 : vector<16x1xf32>
      %26 = arith.mulf %23, %25 : vector<16x1xf32>
      %27 = vector.broadcast %22 : vector<16x1xf32> to vector<16x256xf32>
      %28 = arith.subf %8, %27 : vector<16x256xf32>
      %29 = math.exp %28 : vector<16x256xf32>
      %cst_19 = arith.constant dense<0.000000e+00> : vector<16xf32>
      %30 = vector.multi_reduction <add>, %29, %cst_19 [1] : vector<16x256xf32> to vector<16xf32>
      %31 = vector.shape_cast %30 : vector<16xf32> to vector<16x1xf32>
      %32 = arith.addf %26, %31 : vector<16x1xf32>
      %c0_20 = arith.constant 0 : index
      %c0_21 = arith.constant 0 : index
      %33 = vector.load %arg11[%c0_20, %c0_21] : memref<16x1xf32, #tpu.memory_space<vmem>>, vector<16x1xf32>
      tpu.vector_store %arg11[%c0_20, %c0_21], %32 {strides = array<i32>} : memref<16x1xf32, #tpu.memory_space<vmem>>, vector<16x1xf32>,
      %c0_22 = arith.constant 0 : index
      %c0_23 = arith.constant 0 : index
      %34 = vector.load %arg10[%c0_22, %c0_23] : memref<16x1xf32, #tpu.memory_space<vmem>>, vector<16x1xf32>
      tpu.vector_store %arg10[%c0_22, %c0_23], %22 {strides = array<i32>} : memref<16x1xf32, #tpu.memory_space<vmem>>, vector<16x1xf32>,
    } else {
    }
    %c0_i32_10 = arith.constant 0 : i32
    %13 = arith.cmpi eq, %arg0, %c0_i32_10 : i32
    %14 = arith.extui %13 : i1 to i32
    %c0_i32_11 = arith.constant 0 : i32
    %15 = arith.cmpi ne, %14, %c0_i32_11 : i32
    scf.if %15 {
      %19 = tpu.iota {dimensions = array<i32: 1>} : vector<16x256xi32>
      %c256_i32 = arith.constant 256 : i32
      %20 = arith.muli %arg0, %c256_i32 : i32
      %21 = vector.broadcast %20 : i32 to vector<16x256xi32>
      %22 = arith.addi %19, %21 : vector<16x256xi32>
      %c160_i32 = arith.constant 160 : i32
      %23 = vector.broadcast %c160_i32 : i32 to vector<16x256xi32>
      %24 = arith.cmpi slt, %22, %23 : vector<16x256xi32>
      %cst_14 = arith.constant -1.000000e+30 : f32
      %25 = vector.broadcast %cst_14 : f32 to vector<16x256xf32>
      %26 = arith.select %24, %8, %25 : vector<16x256xi1>, vector<16x256xf32>
      %c0_15 = arith.constant 0 : index
      %c0_16 = arith.constant 0 : index
      %27 = vector.load %arg10[%c0_15, %c0_16] : memref<16x1xf32, #tpu.memory_space<vmem>>, vector<16x1xf32>
      %cst_17 = arith.constant dense<0xFF800000> : vector<16xf32>
      %28 = vector.multi_reduction <maximumf>, %26, %cst_17 [1] : vector<16x256xf32> to vector<16xf32>
      %29 = vector.shape_cast %28 : vector<16xf32> to vector<16x1xf32>
      %30 = arith.maximumf %27, %29 : vector<16x1xf32>
      %c0_18 = arith.constant 0 : index
      %c0_19 = arith.constant 0 : index
      %31 = vector.load %arg11[%c0_18, %c0_19] : memref<16x1xf32, #tpu.memory_space<vmem>>, vector<16x1xf32>
      %32 = arith.subf %27, %30 : vector<16x1xf32>
      %33 = math.exp %32 : vector<16x1xf32>
      %34 = arith.mulf %31, %33 : vector<16x1xf32>
      %35 = vector.broadcast %30 : vector<16x1xf32> to vector<16x256xf32>
      %36 = arith.subf %26, %35 : vector<16x256xf32>
      %37 = math.exp %36 : vector<16x256xf32>
      %cst_20 = arith.constant dense<0.000000e+00> : vector<16xf32>
      %38 = vector.multi_reduction <add>, %37, %cst_20 [1] : vector<16x256xf32> to vector<16xf32>
      %39 = vector.shape_cast %38 : vector<16xf32> to vector<16x1xf32>
      %40 = arith.addf %34, %39 : vector<16x1xf32>
      %c0_21 = arith.constant 0 : index
      %c0_22 = arith.constant 0 : index
      %41 = vector.load %arg11[%c0_21, %c0_22] : memref<16x1xf32, #tpu.memory_space<vmem>>, vector<16x1xf32>
      tpu.vector_store %arg11[%c0_21, %c0_22], %40 {strides = array<i32>} : memref<16x1xf32, #tpu.memory_space<vmem>>, vector<16x1xf32>,
      %c0_23 = arith.constant 0 : index
      %c0_24 = arith.constant 0 : index
      %42 = vector.load %arg10[%c0_23, %c0_24] : memref<16x1xf32, #tpu.memory_space<vmem>>, vector<16x1xf32>
      tpu.vector_store %arg10[%c0_23, %c0_24], %30 {strides = array<i32>} : memref<16x1xf32, #tpu.memory_space<vmem>>, vector<16x1xf32>,
    } else {
    }
    %c0_i32_12 = arith.constant 0 : i32
    %16 = arith.cmpi eq, %arg0, %c0_i32_12 : i32
    %17 = arith.extui %16 : i1 to i32
    %c0_i32_13 = arith.constant 0 : i32
    %18 = arith.cmpi ne, %17, %c0_i32_13 : i32
    scf.if %18 {
      %c0_14 = arith.constant 0 : index
      %c0_15 = arith.constant 0 : index
      %19 = vector.load %arg10[%c0_14, %c0_15] : memref<16x1xf32, #tpu.memory_space<vmem>>, vector<16x1xf32>
      %c0_16 = arith.constant 0 : index
      %c0_17 = arith.constant 0 : index
      %20 = vector.load %arg11[%c0_16, %c0_17] : memref<16x1xf32, #tpu.memory_space<vmem>>, vector<16x1xf32>
      %21 = math.log %20 : vector<16x1xf32>
      %22 = arith.addf %19, %21 : vector<16x1xf32>
      %c0_18 = arith.constant 0 : index
      %c0_19 = arith.constant 0 : index
      %23 = vector.load %arg8[%c0_18, %c0_19] : memref<16x1xf32, #tpu.memory_space<vmem>>, vector<16x1xf32>
      tpu.vector_store %arg8[%c0_18, %c0_19], %22 {strides = array<i32>} : memref<16x1xf32, #tpu.memory_space<vmem>>, vector<16x1xf32>,
    } else {
    }
    return
  }
  func.func @transform_0(%arg0: i32) -> (i32, i32) {
    %c0_i32 = arith.constant 0 : i32
    %c0_i32_0 = arith.constant 0 : i32
    %c0_i32_1 = arith.constant 0 : i32
    return %c0_i32, %c0_i32_0 : i32, i32
  }
  func.func @transform_1(%arg0: i32) -> (i32, i32) {
    %c0_i32 = arith.constant 0 : i32
    %c0_i32_0 = arith.constant 0 : i32
    %c0_i32_1 = arith.constant 0 : i32
    return %c0_i32, %c0_i32_0 : i32, i32
  }
  func.func @transform_2(%arg0: i32) -> (i32, i32) {
    %c0_i32 = arith.constant 0 : i32
    %c0_i32_0 = arith.constant 0 : i32
    %c0_i32_1 = arith.constant 0 : i32
    return %c0_i32, %c0_i32_0 : i32, i32
  }
  func.func @transform_3(%arg0: i32) -> (i32, i32) {
    %c0_i32 = arith.constant 0 : i32
    %c0_i32_0 = arith.constant 0 : i32
    %c0_i32_1 = arith.constant 0 : i32
    return %c0_i32, %c0_i32_0 : i32, i32
  }
  func.func @transform_4(%arg0: i32) -> (i32, i32) {
    %c0_i32 = arith.constant 0 : i32
    %c0_i32_0 = arith.constant 0 : i32
    return %c0_i32, %arg0 : i32, i32
  }
  func.func @transform_5(%arg0: i32) -> (i32, i32) {
    %c0_i32 = arith.constant 0 : i32
    %c0_i32_0 = arith.constant 0 : i32
    return %c0_i32, %arg0 : i32, i32
  }
  func.func @transform_6(%arg0: i32) -> (i32, i32) {
    %c0_i32 = arith.constant 0 : i32
    %c0_i32_0 = arith.constant 0 : i32
    return %c0_i32, %arg0 : i32, i32
  }
  func.func @transform_7(%arg0: i32) -> (i32, i32) {
    %c0_i32 = arith.constant 0 : i32
    %c0_i32_0 = arith.constant 0 : i32
    %c0_i32_1 = arith.constant 0 : i32
    return %c0_i32, %c0_i32_0 : i32, i32
  }
  func.func @transform_8(%arg0: i32) -> (i32, i32) {
    %c0_i32 = arith.constant 0 : i32
    %c0_i32_0 = arith.constant 0 : i32
    %c0_i32_1 = arith.constant 0 : i32
    return %c0_i32, %c0_i32_0 : i32, i32
  }
}

</mosaic_0001>

<llo_original>
// kernel: tpu_custom_call.1
$region0: #{tpu_custom_call.1}
  #allocation0 [shape = 'u32[]', space=smem, size = 0x4, offset = 0x4, fixed_abs, tag = 'smem constant byte address 0x4 - core index']
  #allocation1 [shape = 'u32[144,128]{1,0:T(1,128)}', space=vmem, size = 0x12000, scoped, tag = 'internal scratch']
  #allocation2 [shape = 'f32[16,1]{1,0:T(8,128)}', space=vmem, size = 0x2000, scoped, tag = 'scratch operand']
  #allocation3 [shape = 'f32[16,1]{1,0:T(8,128)}', space=vmem, size = 0x2000, scoped, tag = 'scratch operand']
  #allocation4 [shape = 'bf16[16,128]{1,0:T(16,128)(2,1)}', space=vmem, size = 0x1000, scoped, tag = 'scratch operand']
  %s0 = inlined_call_operand.vmem [shape: bf16[16,256], index: 0, kind: input, shape index: {}]
  %s1 = inlined_call_operand.vmem [shape: f32[16,128], index: 1, kind: input, shape index: {}, may-alias: {1,8}]
  %s2 = inlined_call_operand.hbm [shape: bf16[256,512], index: 2, kind: input, shape index: {}]
  %s3 = inlined_call_operand.vmem [shape: f32[1,512], index: 3, kind: input, shape index: {}]
  %s4 = inlined_call_operand.hbm [shape: bf16[128,256], index: 4, kind: input, shape index: {}]
  %s5 = inlined_call_operand.hbm [shape: f32[1,256], index: 5, kind: input, shape index: {}]
  %s6 = inlined_call_operand.hbm [shape: f32[16,256], index: 6, kind: output, shape index: {0}]
  %s7 = inlined_call_operand.vmem [shape: f32[16,1], index: 7, kind: output, shape index: {1}]
  %s8 = inlined_call_operand.vmem [shape: f32[16,128], index: 8, kind: output, shape index: {2}, may-alias: {1,8}]
  %9 = xla_tuple %s6, %s7, %s8
  %s10 = sld [smem:[#allocation0]]
  $region74: #{tpu_custom_call.1} parent=0
    _
  %s12 = ssub.s32 1, %s10
  %s13 = scalar_select 0, %s12, %s10
  $region1: #{tpu_custom_call.1} parent=0
    #allocation5 [shape = 'u8[262144]{0}', space=vmem, size = 0x40000, scoped, tag = 'input window, operand 2, single buffered']
    #allocation6 [shape = 's32[1]{0}', space=sflag, size = 0x4, scoped, tag = 'scoped memory for tpu_custom_call.1']
    #allocation7 [shape = 's32[1]{0}', space=sflag, size = 0x4, scoped, tag = 'scoped memory for tpu_custom_call.1']
    #allocation8 [shape = 'u8[65536]{0}', space=vmem, size = 0x10000, scoped, tag = 'input window, operand 4, single buffered']
    #allocation9 [shape = 's32[1]{0}', space=sflag, size = 0x4, scoped, tag = 'scoped memory for tpu_custom_call.1']
    #allocation10 [shape = 'u8[1024]{0}', space=vmem, size = 0x400, scoped, tag = 'input window, operand 5, single buffered']
    #allocation11 [shape = 'u8[16384]{0}', space=vmem, size = 0x4000, scoped, tag = 'output window, operand 0, single buffered']
    %14 = vsyncpa [#allocation6], 0
    %15 = vsyncpa [#allocation9], 0
    %16 = vsyncpa [#allocation7], 0
    // Predicated region
    $region2: #{tpu_custom_call.1} parent=1 // pred_check
      _
    $region3: #{tpu_custom_call.1} parent=1 // pred_check_branch
      %18 = sbr.rel (0) target = $region5
    $region4: #{tpu_custom_call.1} parent=1 // pred_region
      _
    $region5: #{tpu_custom_call.1} parent=1 // pred_fallthru
      _
    // Predicated region
    $region6: #{tpu_custom_call.1} parent=1 // pred_check
      _
    $region7: #{tpu_custom_call.1} parent=1 // pred_check_branch
      %20 = sbr.rel (0) target = $region9
    $region8: #{tpu_custom_call.1} parent=1 // pred_region
      _
    $region9: #{tpu_custom_call.1} parent=1 // pred_fallthru
      _
    // Predicated region
    $region10: #{tpu_custom_call.1} parent=1 // pred_check
      _
    $region11: #{tpu_custom_call.1} parent=1 // pred_check_branch
      %22 = sbr.rel (0) target = $region13
    $region12: #{tpu_custom_call.1} parent=1 // pred_region
      %s24 = ssub.s32 8192, 8192
      %25 = vsyncadd [#allocation6], %s24
      %s26 = sshll.u32 [#allocation5], 4
      %s27 = int_to_ptr.vmem [resolvable:$true] %s26
      %32 = dma.hbm_to_vmem [thread:$0]  %s2, 8192, %s27, [#allocation6], 256, 256, 16
    $region13: #{tpu_custom_call.1} parent=1 // pred_fallthru
      _
    // Predicated region
    $region14: #{tpu_custom_call.1} parent=1 // pred_check
      _
    $region15: #{tpu_custom_call.1} parent=1 // pred_check_branch
      %34 = sbr.rel (0) target = $region17
    $region16: #{tpu_custom_call.1} parent=1 // pred_region
      _
    $region17: #{tpu_custom_call.1} parent=1 // pred_fallthru
      _
    // Predicated region
    $region18: #{tpu_custom_call.1} parent=1 // pred_check
      _
    $region19: #{tpu_custom_call.1} parent=1 // pred_check_branch
      %36 = sbr.rel (0) target = $region21
    $region20: #{tpu_custom_call.1} parent=1 // pred_region
      %s38 = ssub.s32 2048, 2048
      %39 = vsyncadd [#allocation9], %s38
      %s40 = sshll.u32 [#allocation8], 4
      %s41 = int_to_ptr.vmem [resolvable:$true] %s40
      %46 = dma.hbm_to_vmem [thread:$0]  %s4, 2048, %s41, [#allocation9], 128, 128, 8
    $region21: #{tpu_custom_call.1} parent=1 // pred_fallthru
      _
    // Predicated region
    $region22: #{tpu_custom_call.1} parent=1 // pred_check
      _
    $region23: #{tpu_custom_call.1} parent=1 // pred_check_branch
      %48 = sbr.rel (0) target = $region25
    $region24: #{tpu_custom_call.1} parent=1 // pred_region
      %s50 = ssub.s32 32, 32
      %51 = vsyncadd [#allocation9], %s50
      %s53 = sshll.u32 [#allocation10], 4
      %s54 = int_to_ptr.vmem [resolvable:$true] %s53
      %56 = dma.hbm_to_vmem [thread:$0]  %s5, 32, %s54, [#allocation9]
    $region25: #{tpu_custom_call.1} parent=1 // pred_fallthru
      _
    // Predicated region
    $region26: #{tpu_custom_call.1} parent=1 // pred_check
      _
    $region27: #{tpu_custom_call.1} parent=1 // pred_check_branch
      %58 = sbr.rel (0) target = $region29
    $region28: #{tpu_custom_call.1} parent=1 // pred_region
      %59 = dma.done [#allocation6], 8192
    $region29: #{tpu_custom_call.1} parent=1 // pred_fallthru
      _
    // Predicated region
    $region30: #{tpu_custom_call.1} parent=1 // pred_check
      _
    $region31: #{tpu_custom_call.1} parent=1 // pred_check_branch
      %61 = sbr.rel (0) target = $region33
    $region32: #{tpu_custom_call.1} parent=1 // pred_region
      %62 = dma.done [#allocation9], 2048
    $region33: #{tpu_custom_call.1} parent=1 // pred_fallthru
      _
    // Predicated region
    $region34: #{tpu_custom_call.1} parent=1 // pred_check
      _
    $region35: #{tpu_custom_call.1} parent=1 // pred_check_branch
      %64 = sbr.rel (0) target = $region37
    $region36: #{tpu_custom_call.1} parent=1 // pred_region
      %65 = dma.done [#allocation9], 32
    $region37: #{tpu_custom_call.1} parent=1 // pred_fallthru
      _
    %p67 = scmp.eq.s32.totalorder 0, 0
    // Predicated region
    $region38: #{tpu_custom_call.1} parent=1 // pred_check
      %p68 = pneg %p67
    $region39: #{tpu_custom_call.1} parent=1 // pred_check_branch
      %70 = sbr.rel (%p68) target = $region41
    $region40: #{tpu_custom_call.1} parent=1 // pred_region
      %v71 = vld [vmem:[%s0] sm:$0xff]
      %v72 = vld [vmem:[%s0 + $0x8] sm:$0xff]
      %v73 = vld [vmem:[%s1] sm:$0xff]
      %v74 = vld [vmem:[%s1 + $0x8] sm:$0xff]
      %v75 = vld [vmem:[#allocation5] sm:$0xff]
      %v76 = vld [vmem:[#allocation5 + $0x8] sm:$0xff]
      %v77 = vld [vmem:[#allocation5 + $0x10] sm:$0xff]
      %v78 = vld [vmem:[#allocation5 + $0x18] sm:$0xff]
      %v79 = vld [vmem:[#allocation5 + $0x20] sm:$0xff]
      %v80 = vld [vmem:[#allocation5 + $0x28] sm:$0xff]
      %v81 = vld [vmem:[#allocation5 + $0x30] sm:$0xff]
      %v82 = vld [vmem:[#allocation5 + $0x38] sm:$0xff]
      %v83 = vld [vmem:[#allocation5 + $0x40] sm:$0xff]
      %v84 = vld [vmem:[#allocation5 + $0x48] sm:$0xff]
      %v85 = vld [vmem:[#allocation5 + $0x50] sm:$0xff]
      %v86 = vld [vmem:[#allocation5 + $0x58] sm:$0xff]
      %v87 = vld [vmem:[#allocation5 + $0x60] sm:$0xff]
      %v88 = vld [vmem:[#allocation5 + $0x68] sm:$0xff]
      %v89 = vld [vmem:[#allocation5 + $0x70] sm:$0xff]
      %v90 = vld [vmem:[#allocation5 + $0x78] sm:$0xff]
      %v91 = vld [vmem:[#allocation5 + $0x80] sm:$0xff]
      %v92 = vld [vmem:[#allocation5 + $0x88] sm:$0xff]
      %v93 = vld [vmem:[#allocation5 + $0x90] sm:$0xff]
      %v94 = vld [vmem:[#allocation5 + $0x98] sm:$0xff]
      %v95 = vld [vmem:[#allocation5 + $0xa0] sm:$0xff]
      %v96 = vld [vmem:[#allocation5 + $0xa8] sm:$0xff]
      %v97 = vld [vmem:[#allocation5 + $0xb0] sm:$0xff]
      %v98 = vld [vmem:[#allocation5 + $0xb8] sm:$0xff]
      %v99 = vld [vmem:[#allocation5 + $0xc0] sm:$0xff]
      %v100 = vld [vmem:[#allocation5 + $0xc8] sm:$0xff]
      %v101 = vld [vmem:[#allocation5 + $0xd0] sm:$0xff]
      %v102 = vld [vmem:[#allocation5 + $0xd8] sm:$0xff]
      %v103 = vld [vmem:[#allocation5 + $0xe0] sm:$0xff]
      %v104 = vld [vmem:[#allocation5 + $0xe8] sm:$0xff]
      %v105 = vld [vmem:[#allocation5 + $0xf0] sm:$0xff]
      %v106 = vld [vmem:[#allocation5 + $0xf8] sm:$0xff]
      %v107 = vld [vmem:[#allocation5 + $0x100] sm:$0xff]
      %v108 = vld [vmem:[#allocation5 + $0x108] sm:$0xff]
      %v109 = vld [vmem:[#allocation5 + $0x110] sm:$0xff]
      %v110 = vld [vmem:[#allocation5 + $0x118] sm:$0xff]
      %v111 = vld [vmem:[#allocation5 + $0x120] sm:$0xff]
      %v112 = vld [vmem:[#allocation5 + $0x128] sm:$0xff]
      %v113 = vld [vmem:[#allocation5 + $0x130] sm:$0xff]
      %v114 = vld [vmem:[#allocation5 + $0x138] sm:$0xff]
      %v115 = vld [vmem:[#allocation5 + $0x140] sm:$0xff]
      %v116 = vld [vmem:[#allocation5 + $0x148] sm:$0xff]
      %v117 = vld [vmem:[#allocation5 + $0x150] sm:$0xff]
      %v118 = vld [vmem:[#allocation5 + $0x158] sm:$0xff]
      %v119 = vld [vmem:[#allocation5 + $0x160] sm:$0xff]
      %v120 = vld [vmem:[#allocation5 + $0x168] sm:$0xff]
      %v121 = vld [vmem:[#allocation5 + $0x170] sm:$0xff]
      %v122 = vld [vmem:[#allocation5 + $0x178] sm:$0xff]
      %v123 = vld [vmem:[#allocation5 + $0x180] sm:$0xff]
      %v124 = vld [vmem:[#allocation5 + $0x188] sm:$0xff]
      %v125 = vld [vmem:[#allocation5 + $0x190] sm:$0xff]
      %v126 = vld [vmem:[#allocation5 + $0x198] sm:$0xff]
      %v127 = vld [vmem:[#allocation5 + $0x1a0] sm:$0xff]
      %v128 = vld [vmem:[#allocation5 + $0x1a8] sm:$0xff]
      %v129 = vld [vmem:[#allocation5 + $0x1b0] sm:$0xff]
      %v130 = vld [vmem:[#allocation5 + $0x1b8] sm:$0xff]
      %v131 = vld [vmem:[#allocation5 + $0x1c0] sm:$0xff]
      %v132 = vld [vmem:[#allocation5 + $0x1c8] sm:$0xff]
      %v133 = vld [vmem:[#allocation5 + $0x1d0] sm:$0xff]
      %v134 = vld [vmem:[#allocation5 + $0x1d8] sm:$0xff]
      %v135 = vld [vmem:[#allocation5 + $0x1e0] sm:$0xff]
      %v136 = vld [vmem:[#allocation5 + $0x1e8] sm:$0xff]
      %v137 = vld [vmem:[#allocation5 + $0x1f0] sm:$0xff]
      %v138 = vld [vmem:[#allocation5 + $0x1f8] sm:$0xff]
      %v139 = vld [vmem:[%s3] sm:$0xf]
      %v141 = vlaneseq
      %v142 = vshrl.u32 %v141, 7
      %v143 = vsub.s32 0, %v142
      %v144 = vrot.slane %v139, %v143
      %v145 = vlaneseq
      %v146 = vshrl.u32 %v145, 7
      %v147 = vsub.s32 1, %v146
      %v148 = vrot.slane %v139, %v147
      %v149 = vlaneseq
      %v150 = vshrl.u32 %v149, 7
      %v151 = vsub.s32 2, %v150
      %v152 = vrot.slane %v139, %v151
      %v153 = vlaneseq
      %v154 = vshrl.u32 %v153, 7
      %v155 = vsub.s32 3, %v154
      %v156 = vrot.slane %v139, %v155
      %v163 = vunpack.c.l.b16 %v71
      %v164 = vunpack.c.h.b16 %v71
      %v165 = vunpack.c.l.b16 %v72
      %v166 = vunpack.c.h.b16 %v72
      %v167 = vpack.c.b16 %v165, %v163
      %v168 = vpack.c.b16 %v166, %v164
      %v235 = vunpack.c.l.b16 %v75
      %v236 = vunpack.c.h.b16 %v75
      %v237 = vunpack.c.l.b16 %v76
      %v238 = vunpack.c.h.b16 %v76
      %v239 = vunpack.c.l.b16 %v77
      %v240 = vunpack.c.h.b16 %v77
      %v241 = vunpack.c.l.b16 %v78
      %v242 = vunpack.c.h.b16 %v78
      %v243 = vunpack.c.l.b16 %v79
      %v244 = vunpack.c.h.b16 %v79
      %v245 = vunpack.c.l.b16 %v80
      %v246 = vunpack.c.h.b16 %v80
      %v247 = vunpack.c.l.b16 %v81
      %v248 = vunpack.c.h.b16 %v81
      %v249 = vunpack.c.l.b16 %v82
      %v250 = vunpack.c.h.b16 %v82
      %v251 = vunpack.c.l.b16 %v83
      %v252 = vunpack.c.h.b16 %v83
      %v253 = vunpack.c.l.b16 %v84
      %v254 = vunpack.c.h.b16 %v84
      %v255 = vunpack.c.l.b16 %v85
      %v256 = vunpack.c.h.b16 %v85
      %v257 = vunpack.c.l.b16 %v86
      %v258 = vunpack.c.h.b16 %v86
      %v259 = vunpack.c.l.b16 %v87
      %v260 = vunpack.c.h.b16 %v87
      %v261 = vunpack.c.l.b16 %v88
      %v262 = vunpack.c.h.b16 %v88
      %v263 = vunpack.c.l.b16 %v89
      %v264 = vunpack.c.h.b16 %v89
      %v265 = vunpack.c.l.b16 %v90
      %v266 = vunpack.c.h.b16 %v90
      %v267 = vunpack.c.l.b16 %v91
      %v268 = vunpack.c.h.b16 %v91
      %v269 = vunpack.c.l.b16 %v92
      %v270 = vunpack.c.h.b16 %v92
      %v271 = vunpack.c.l.b16 %v93
      %v272 = vunpack.c.h.b16 %v93
      %v273 = vunpack.c.l.b16 %v94
      %v274 = vunpack.c.h.b16 %v94
      %v275 = vunpack.c.l.b16 %v95
      %v276 = vunpack.c.h.b16 %v95
      %v277 = vunpack.c.l.b16 %v96
      %v278 = vunpack.c.h.b16 %v96
      %v279 = vunpack.c.l.b16 %v97
      %v280 = vunpack.c.h.b16 %v97
      %v281 = vunpack.c.l.b16 %v98
      %v282 = vunpack.c.h.b16 %v98
      %v283 = vunpack.c.l.b16 %v99
      %v284 = vunpack.c.h.b16 %v99
      %v285 = vunpack.c.l.b16 %v100
      %v286 = vunpack.c.h.b16 %v100
      %v287 = vunpack.c.l.b16 %v101
      %v288 = vunpack.c.h.b16 %v101
      %v289 = vunpack.c.l.b16 %v102
      %v290 = vunpack.c.h.b16 %v102
      %v291 = vunpack.c.l.b16 %v103
      %v292 = vunpack.c.h.b16 %v103
      %v293 = vunpack.c.l.b16 %v104
      %v294 = vunpack.c.h.b16 %v104
      %v295 = vunpack.c.l.b16 %v105
      %v296 = vunpack.c.h.b16 %v105
      %v297 = vunpack.c.l.b16 %v106
      %v298 = vunpack.c.h.b16 %v106
      %v299 = vunpack.c.l.b16 %v107
      %v300 = vunpack.c.h.b16 %v107
      %v301 = vunpack.c.l.b16 %v108
      %v302 = vunpack.c.h.b16 %v108
      %v303 = vunpack.c.l.b16 %v109
      %v304 = vunpack.c.h.b16 %v109
      %v305 = vunpack.c.l.b16 %v110
      %v306 = vunpack.c.h.b16 %v110
      %v307 = vunpack.c.l.b16 %v111
      %v308 = vunpack.c.h.b16 %v111
      %v309 = vunpack.c.l.b16 %v112
      %v310 = vunpack.c.h.b16 %v112
      %v311 = vunpack.c.l.b16 %v113
      %v312 = vunpack.c.h.b16 %v113
      %v313 = vunpack.c.l.b16 %v114
      %v314 = vunpack.c.h.b16 %v114
      %v315 = vunpack.c.l.b16 %v115
      %v316 = vunpack.c.h.b16 %v115
      %v317 = vunpack.c.l.b16 %v116
      %v318 = vunpack.c.h.b16 %v116
      %v319 = vunpack.c.l.b16 %v117
      %v320 = vunpack.c.h.b16 %v117
      %v321 = vunpack.c.l.b16 %v118
      %v322 = vunpack.c.h.b16 %v118
      %v323 = vunpack.c.l.b16 %v119
      %v324 = vunpack.c.h.b16 %v119
      %v325 = vunpack.c.l.b16 %v120
      %v326 = vunpack.c.h.b16 %v120
      %v327 = vunpack.c.l.b16 %v121
      %v328 = vunpack.c.h.b16 %v121
      %v329 = vunpack.c.l.b16 %v122
      %v330 = vunpack.c.h.b16 %v122
      %v331 = vunpack.c.l.b16 %v123
      %v332 = vunpack.c.h.b16 %v123
      %v333 = vunpack.c.l.b16 %v124
      %v334 = vunpack.c.h.b16 %v124
      %v335 = vunpack.c.l.b16 %v125
      %v336 = vunpack.c.h.b16 %v125
      %v337 = vunpack.c.l.b16 %v126
      %v338 = vunpack.c.h.b16 %v126
      %v339 = vunpack.c.l.b16 %v127
      %v340 = vunpack.c.h.b16 %v127
      %v341 = vunpack.c.l.b16 %v128
      %v342 = vunpack.c.h.b16 %v128
      %v343 = vunpack.c.l.b16 %v129
      %v344 = vunpack.c.h.b16 %v129
      %v345 = vunpack.c.l.b16 %v130
      %v346 = vunpack.c.h.b16 %v130
      %v347 = vunpack.c.l.b16 %v131
      %v348 = vunpack.c.h.b16 %v131
      %v349 = vunpack.c.l.b16 %v132
      %v350 = vunpack.c.h.b16 %v132
      %v351 = vunpack.c.l.b16 %v133
      %v352 = vunpack.c.h.b16 %v133
      %v353 = vunpack.c.l.b16 %v134
      %v354 = vunpack.c.h.b16 %v134
      %v355 = vunpack.c.l.b16 %v135
      %v356 = vunpack.c.h.b16 %v135
      %v357 = vunpack.c.l.b16 %v136
      %v358 = vunpack.c.h.b16 %v136
      %v359 = vunpack.c.l.b16 %v137
      %v360 = vunpack.c.h.b16 %v137
      %v361 = vunpack.c.l.b16 %v138
      %v362 = vunpack.c.h.b16 %v138
      %v363 = vpack.c.b16 %v239, %v235
      %v364 = vpack.c.b16 %v240, %v236
      %v365 = vpack.c.b16 %v241, %v237
      %v366 = vpack.c.b16 %v242, %v238
      %v367 = vpack.c.b16 %v247, %v243
      %v368 = vpack.c.b16 %v248, %v244
      %v369 = vpack.c.b16 %v249, %v245
      %v370 = vpack.c.b16 %v250, %v246
      %v371 = vpack.c.b16 %v255, %v251
      %v372 = vpack.c.b16 %v256, %v252
      %v373 = vpack.c.b16 %v257, %v253
      %v374 = vpack.c.b16 %v258, %v254
      %v375 = vpack.c.b16 %v263, %v259
      %v376 = vpack.c.b16 %v264, %v260
      %v377 = vpack.c.b16 %v265, %v261
      %v378 = vpack.c.b16 %v266, %v262
      %v379 = vpack.c.b16 %v271, %v267
      %v380 = vpack.c.b16 %v272, %v268
      %v381 = vpack.c.b16 %v273, %v269
      %v382 = vpack.c.b16 %v274, %v270
      %v383 = vpack.c.b16 %v279, %v275
      %v384 = vpack.c.b16 %v280, %v276
      %v385 = vpack.c.b16 %v281, %v277
      %v386 = vpack.c.b16 %v282, %v278
      %v387 = vpack.c.b16 %v287, %v283
      %v388 = vpack.c.b16 %v288, %v284
      %v389 = vpack.c.b16 %v289, %v285
      %v390 = vpack.c.b16 %v290, %v286
      %v391 = vpack.c.b16 %v295, %v291
      %v392 = vpack.c.b16 %v296, %v292
      %v393 = vpack.c.b16 %v297, %v293
      %v394 = vpack.c.b16 %v298, %v294
      %v395 = vpack.c.b16 %v303, %v299
      %v396 = vpack.c.b16 %v304, %v300
      %v397 = vpack.c.b16 %v305, %v301
      %v398 = vpack.c.b16 %v306, %v302
      %v399 = vpack.c.b16 %v311, %v307
      %v400 = vpack.c.b16 %v312, %v308
      %v401 = vpack.c.b16 %v313, %v309
      %v402 = vpack.c.b16 %v314, %v310
      %v403 = vpack.c.b16 %v319, %v315
      %v404 = vpack.c.b16 %v320, %v316
      %v405 = vpack.c.b16 %v321, %v317
      %v406 = vpack.c.b16 %v322, %v318
      %v407 = vpack.c.b16 %v327, %v323
      %v408 = vpack.c.b16 %v328, %v324
      %v409 = vpack.c.b16 %v329, %v325
      %v410 = vpack.c.b16 %v330, %v326
      %v411 = vpack.c.b16 %v335, %v331
      %v412 = vpack.c.b16 %v336, %v332
      %v413 = vpack.c.b16 %v337, %v333
      %v414 = vpack.c.b16 %v338, %v334
      %v415 = vpack.c.b16 %v343, %v339
      %v416 = vpack.c.b16 %v344, %v340
      %v417 = vpack.c.b16 %v345, %v341
      %v418 = vpack.c.b16 %v346, %v342
      %v419 = vpack.c.b16 %v351, %v347
      %v420 = vpack.c.b16 %v352, %v348
      %v421 = vpack.c.b16 %v353, %v349
      %v422 = vpack.c.b16 %v354, %v350
      %v423 = vpack.c.b16 %v359, %v355
      %v424 = vpack.c.b16 %v360, %v356
      %v425 = vpack.c.b16 %v361, %v357
      %v426 = vpack.c.b16 %v362, %v358
      %491 = vmatprep.subr.bf16.mxu0 %v364
      %492 = vmatpush1.bf16.msra.mxu0 %v363
      %493 = vmatprep.subr.bf16.mxu0 %v368
      %494 = vmatpush1.bf16.msra.mxu0 %v367
      %495 = vmatprep.subr.bf16.mxu0 %v372
      %496 = vmatpush1.bf16.msra.mxu0 %v371
      %497 = vmatprep.subr.bf16.mxu0 %v376
      %498 = vmatpush1.bf16.msra.mxu0 %v375
      %499 = vmatprep.subr.bf16.mxu0 %v380
      %500 = vmatpush1.bf16.msra.mxu0 %v379
      %501 = vmatprep.subr.bf16.mxu0 %v384
      %502 = vmatpush1.bf16.msra.mxu0 %v383
      %503 = vmatprep.subr.bf16.mxu0 %v388
      %504 = vmatpush1.bf16.msra.mxu0 %v387
      %505 = vmatprep.subr.bf16.mxu0 %v392
      %506 = vmatpush1.bf16.msra.mxu0 %v391
      %507 = vmatprep.subr.bf16.mxu0 %v396
      %508 = vmatpush1.bf16.msra.mxu0 %v395
      %509 = vmatprep.subr.bf16.mxu0 %v400
      %510 = vmatpush1.bf16.msra.mxu0 %v399
      %511 = vmatprep.subr.bf16.mxu0 %v404
      %512 = vmatpush1.bf16.msra.mxu0 %v403
      %513 = vmatprep.subr.bf16.mxu0 %v408
      %514 = vmatpush1.bf16.msra.mxu0 %v407
      %515 = vmatprep.subr.bf16.mxu0 %v412
      %516 = vmatpush1.bf16.msra.mxu0 %v411
      %517 = vmatprep.subr.bf16.mxu0 %v416
      %518 = vmatpush1.bf16.msra.mxu0 %v415
      %519 = vmatprep.subr.bf16.mxu0 %v420
      %520 = vmatpush1.bf16.msra.mxu0 %v419
      %521 = vmatprep.subr.bf16.mxu0 %v424
      %522 = vmatpush1.bf16.msra.mxu0 %v423
      %523 = vmatprep.mubr.bf16.mxu0 %v168
      %524 = vmatmul.mubr.bf16.gmra.mrb[0].mxu0 %v167
      %v525 = vpop.f32.mrb[0].mxu0
      %v526 = vadd.f32 %v144, %v525
      %v527 = vpop.f32.mrb[0].mxu0
      %v528 = vadd.f32 %v148, %v527
      %v529 = vpop.f32.mrb[0].mxu0
      %v530 = vadd.f32 %v144, %v529
      %v531 = vpop.f32.mrb[0].mxu0
      %v532 = vadd.f32 %v148, %v531
      %533 = vdwg.mxu0
      %534 = vmatprep.subr.bf16.mxu0 %v366
      %535 = vmatpush1.bf16.msra.mxu0 %v365
      %536 = vmatprep.subr.bf16.mxu0 %v370
      %537 = vmatpush1.bf16.msra.mxu0 %v369
      %538 = vmatprep.subr.bf16.mxu0 %v374
      %539 = vmatpush1.bf16.msra.mxu0 %v373
      %540 = vmatprep.subr.bf16.mxu0 %v378
      %541 = vmatpush1.bf16.msra.mxu0 %v377
      %542 = vmatprep.subr.bf16.mxu0 %v382
      %543 = vmatpush1.bf16.msra.mxu0 %v381
      %544 = vmatprep.subr.bf16.mxu0 %v386
      %545 = vmatpush1.bf16.msra.mxu0 %v385
      %546 = vmatprep.subr.bf16.mxu0 %v390
      %547 = vmatpush1.bf16.msra.mxu0 %v389
      %548 = vmatprep.subr.bf16.mxu0 %v394
      %549 = vmatpush1.bf16.msra.mxu0 %v393
      %550 = vmatprep.subr.bf16.mxu0 %v398
      %551 = vmatpush1.bf16.msra.mxu0 %v397
      %552 = vmatprep.subr.bf16.mxu0 %v402
      %553 = vmatpush1.bf16.msra.mxu0 %v401
      %554 = vmatprep.subr.bf16.mxu0 %v406
      %555 = vmatpush1.bf16.msra.mxu0 %v405
      %556 = vmatprep.subr.bf16.mxu0 %v410
      %557 = vmatpush1.bf16.msra.mxu0 %v409
      %558 = vmatprep.subr.bf16.mxu0 %v414
      %559 = vmatpush1.bf16.msra.mxu0 %v413
      %560 = vmatprep.subr.bf16.mxu0 %v418
      %561 = vmatpush1.bf16.msra.mxu0 %v417
      %562 = vmatprep.subr.bf16.mxu0 %v422
      %563 = vmatpush1.bf16.msra.mxu0 %v421
      %564 = vmatprep.subr.bf16.mxu0 %v426
      %565 = vmatpush1.bf16.msra.mxu0 %v425
      %566 = vmatprep.mubr.bf16.mxu0 %v168
      %567 = vmatmul.mubr.bf16.gmra.mrb[0].mxu0 %v167
      %v568 = vpop.f32.mrb[0].mxu0
      %v569 = vadd.f32 %v152, %v568
      %v570 = vpop.f32.mrb[0].mxu0
      %v571 = vadd.f32 %v156, %v570
      %v572 = vpop.f32.mrb[0].mxu0
      %v573 = vadd.f32 %v152, %v572
      %v574 = vpop.f32.mrb[0].mxu0
      %v575 = vadd.f32 %v156, %v574
      %576 = vdwg.mxu0
      %v577 = vxor.u32 %v526, 2147483648
      %v578 = vxor.u32 %v530, 2147483648
      %v579 = vmul.f32 %v577, 1.442695
      %v580 = vpow.pop %v579
      %v581 = vmul.f32 %v578, 1.442695
      %v582 = vpow.pop %v581
      %v583 = vadd.f32 %v580, 1.0
      %v584 = vadd.f32 %v582, 1.0
      %v585 = vrcp.pop %v583
      %v586 = vmul.f32 1.0, %v585
      %v587 = vrcp.pop %v584
      %v588 = vmul.f32 1.0, %v587
      %v589 = vxor.u32 %v528, 2147483648
      %v590 = vxor.u32 %v532, 2147483648
      %v591 = vmul.f32 %v589, 1.442695
      %v592 = vpow.pop %v591
      %v593 = vmul.f32 %v590, 1.442695
      %v594 = vpow.pop %v593
      %v595 = vadd.f32 %v592, 1.0
      %v596 = vadd.f32 %v594, 1.0
      %v597 = vrcp.pop %v595
      %v598 = vmul.f32 1.0, %v597
      %v599 = vrcp.pop %v596
      %v600 = vmul.f32 1.0, %v599
      %v601 = vmul.f32 %v586, %v571
      %v602 = vmul.f32 %v588, %v575
      %v603 = vadd.f32 %v569, %v601
      %v604 = vadd.f32 %v573, %v602
      %v605 = vtanh.pop %v603
      %v606 = vtanh.pop %v604
      %v607 = vsub.f32 1.0, %v598
      %v608 = vsub.f32 1.0, %v600
      %v609 = vmul.f32 %v607, %v605
      %v610 = vmul.f32 %v608, %v606
      %v611 = vmul.f32 %v598, %v73
      %v612 = vmul.f32 %v600, %v74
      %v613 = vadd.f32 %v609, %v611
      %v614 = vadd.f32 %v610, %v612
      %615 = vst [vmem:[%s8] sm:$0xff] %v613
      %616 = vst [vmem:[%s8 + $0x8] sm:$0xff] %v614
      %v617 = vpack.c.bf16 %v614, %v613
      %618 = vst [vmem:[#allocation4] sm:$0xff] %v617
      %vm619 = vcmask 7168
      %620 = vst.msk [vmem:[#allocation2] sm:$0xff] %vm619, -1e+30
      %621 = vst.msk [vmem:[#allocation2 + $0x8] sm:$0xff] %vm619, -1e+30
      %622 = vst.msk [vmem:[#allocation3] sm:$0xff] %vm619, 0.0
      %623 = vst.msk [vmem:[#allocation3 + $0x8] sm:$0xff] %vm619, 0.0
    $region41: #{tpu_custom_call.1} parent=1 // pred_fallthru
      _
    %v624 = vld [vmem:[#allocation4] sm:$0xff]
    %v625 = vld [vmem:[#allocation8] sm:$0xff]
    %v626 = vld [vmem:[#allocation8 + $0x8] sm:$0xff]
    %v627 = vld [vmem:[#allocation8 + $0x10] sm:$0xff]
    %v628 = vld [vmem:[#allocation8 + $0x18] sm:$0xff]
    %v629 = vld [vmem:[#allocation8 + $0x20] sm:$0xff]
    %v630 = vld [vmem:[#allocation8 + $0x28] sm:$0xff]
    %v631 = vld [vmem:[#allocation8 + $0x30] sm:$0xff]
    %v632 = vld [vmem:[#allocation8 + $0x38] sm:$0xff]
    %v633 = vld [vmem:[#allocation8 + $0x40] sm:$0xff]
    %v634 = vld [vmem:[#allocation8 + $0x48] sm:$0xff]
    %v635 = vld [vmem:[#allocation8 + $0x50] sm:$0xff]
    %v636 = vld [vmem:[#allocation8 + $0x58] sm:$0xff]
    %v637 = vld [vmem:[#allocation8 + $0x60] sm:$0xff]
    %v638 = vld [vmem:[#allocation8 + $0x68] sm:$0xff]
    %v639 = vld [vmem:[#allocation8 + $0x70] sm:$0xff]
    %v640 = vld [vmem:[#allocation8 + $0x78] sm:$0xff]
    %v641 = vld [vmem:[#allocation10] sm:$0x3]
    %v643 = vlaneseq
    %v644 = vshrl.u32 %v643, 7
    %v645 = vsub.s32 0, %v644
    %v646 = vrot.slane %v641, %v645
    %v647 = vlaneseq
    %v648 = vshrl.u32 %v647, 7
    %v649 = vsub.s32 1, %v648
    %v650 = vrot.slane %v641, %v649
    %v669 = vunpack.c.l.b16 %v625
    %v670 = vunpack.c.h.b16 %v625
    %v671 = vunpack.c.l.b16 %v626
    %v672 = vunpack.c.h.b16 %v626
    %v673 = vunpack.c.l.b16 %v627
    %v674 = vunpack.c.h.b16 %v627
    %v675 = vunpack.c.l.b16 %v628
    %v676 = vunpack.c.h.b16 %v628
    %v677 = vunpack.c.l.b16 %v629
    %v678 = vunpack.c.h.b16 %v629
    %v679 = vunpack.c.l.b16 %v630
    %v680 = vunpack.c.h.b16 %v630
    %v681 = vunpack.c.l.b16 %v631
    %v682 = vunpack.c.h.b16 %v631
    %v683 = vunpack.c.l.b16 %v632
    %v684 = vunpack.c.h.b16 %v632
    %v685 = vunpack.c.l.b16 %v633
    %v686 = vunpack.c.h.b16 %v633
    %v687 = vunpack.c.l.b16 %v634
    %v688 = vunpack.c.h.b16 %v634
    %v689 = vunpack.c.l.b16 %v635
    %v690 = vunpack.c.h.b16 %v635
    %v691 = vunpack.c.l.b16 %v636
    %v692 = vunpack.c.h.b16 %v636
    %v693 = vunpack.c.l.b16 %v637
    %v694 = vunpack.c.h.b16 %v637
    %v695 = vunpack.c.l.b16 %v638
    %v696 = vunpack.c.h.b16 %v638
    %v697 = vunpack.c.l.b16 %v639
    %v698 = vunpack.c.h.b16 %v639
    %v699 = vunpack.c.l.b16 %v640
    %v700 = vunpack.c.h.b16 %v640
    %v701 = vpack.c.b16 %v671, %v669
    %v702 = vpack.c.b16 %v672, %v670
    %v703 = vpack.c.b16 %v675, %v673
    %v704 = vpack.c.b16 %v676, %v674
    %v705 = vpack.c.b16 %v679, %v677
    %v706 = vpack.c.b16 %v680, %v678
    %v707 = vpack.c.b16 %v683, %v681
    %v708 = vpack.c.b16 %v684, %v682
    %v709 = vpack.c.b16 %v687, %v685
    %v710 = vpack.c.b16 %v688, %v686
    %v711 = vpack.c.b16 %v691, %v689
    %v712 = vpack.c.b16 %v692, %v690
    %v713 = vpack.c.b16 %v695, %v693
    %v714 = vpack.c.b16 %v696, %v694
    %v715 = vpack.c.b16 %v699, %v697
    %v716 = vpack.c.b16 %v700, %v698
    %733 = vmatprep.subr.bf16.mxu0 %v702
    %734 = vmatpush1.bf16.msra.mxu0 %v701
    %735 = vmatprep.subr.bf16.mxu0 %v704
    %736 = vmatpush1.bf16.msra.mxu0 %v703
    %737 = vmatprep.subr.bf16.mxu0 %v706
    %738 = vmatpush1.bf16.msra.mxu0 %v705
    %739 = vmatprep.subr.bf16.mxu0 %v708
    %740 = vmatpush1.bf16.msra.mxu0 %v707
    %741 = vmatprep.subr.bf16.mxu0 %v710
    %742 = vmatpush1.bf16.msra.mxu0 %v709
    %743 = vmatprep.subr.bf16.mxu0 %v712
    %744 = vmatpush1.bf16.msra.mxu0 %v711
    %745 = vmatprep.subr.bf16.mxu0 %v714
    %746 = vmatpush1.bf16.msra.mxu0 %v713
    %747 = vmatprep.subr.bf16.mxu0 %v716
    %748 = vmatpush1.bf16.msra.mxu0 %v715
    %749 = vmatprep.subr.bf16.mxu0 0
    %750 = vmatpush1.bf16.msra.mxu0 0
    %751 = vmatprep.subr.bf16.mxu0 0
    %752 = vmatpush1.bf16.msra.mxu0 0
    %753 = vmatprep.subr.bf16.mxu0 0
    %754 = vmatpush1.bf16.msra.mxu0 0
    %755 = vmatprep.subr.bf16.mxu0 0
    %756 = vmatpush1.bf16.msra.mxu0 0
    %757 = vmatprep.subr.bf16.mxu0 0
    %758 = vmatpush1.bf16.msra.mxu0 0
    %759 = vmatprep.subr.bf16.mxu0 0
    %760 = vmatpush1.bf16.msra.mxu0 0
    %761 = vmatprep.subr.bf16.mxu0 0
    %762 = vmatpush1.bf16.msra.mxu0 0
    %763 = vmatprep.subr.bf16.mxu0 0
    %764 = vmatpush1.bf16.msra.mxu0 0
    %765 = vmatprep.mubr.bf16.mxu0 0
    %766 = vmatmul.mubr.bf16.gmra.mrb[0].mxu0 %v624
    %v767 = vpop.f32.mrb[0].mxu0
    %v768 = vadd.f32 %v646, %v767
    %v769 = vpop.f32.mrb[0].mxu0
    %v770 = vadd.f32 %v650, %v769
    %v771 = vpop.f32.mrb[0].mxu0
    %v772 = vadd.f32 %v646, %v771
    %v773 = vpop.f32.mrb[0].mxu0
    %v774 = vadd.f32 %v650, %v773
    %775 = vdwg.mxu0
    %776 = vst [vmem:[#allocation11] sm:$0xff] %v768
    %777 = vst [vmem:[#allocation11 + $0x8] sm:$0xff] %v770
    %778 = vst [vmem:[#allocation11 + $0x10] sm:$0xff] %v772
    %779 = vst [vmem:[#allocation11 + $0x18] sm:$0xff] %v774
    %p780 = scmp.ne.s32.totalorder 0, 0
    // Predicated region
    $region42: #{tpu_custom_call.1} parent=1 // pred_check
      %p781 = pneg %p780
    $region43: #{tpu_custom_call.1} parent=1 // pred_check_branch
      %783 = sbr.rel (%p781) target = $region45
    $region44: #{tpu_custom_call.1} parent=1 // pred_region
      %v784 = vld [vmem:[#allocation2] sm:$0xff]
      %v785 = vld [vmem:[#allocation2 + $0x8] sm:$0xff]
      %v786 = vmax.f32 %v768, %v770
      %787 = vmax.xlane.f32.xlu0 %v786
      %v788 = vpop.xlane.xlu0 %787
      %v789 = vmax.f32 %v772, %v774
      %790 = vmax.xlane.f32.xlu0 %v789
      %v791 = vpop.xlane.xlu0 %790
      %v792 = vmax.f32 %v784, %v788
      %v793 = vmax.f32 %v785, %v791
      %v794 = vld [vmem:[#allocation3] sm:$0xff]
      %v795 = vld [vmem:[#allocation3 + $0x8] sm:$0xff]
      %v796 = vsub.f32 %v784, %v792
      %v797 = vsub.f32 %v785, %v793
      %v798 = vmul.f32 %v796, 1.442695
      %v799 = vpow.pop %v798
      %v800 = vmul.f32 %v797, 1.442695
      %v801 = vpow.pop %v800
      %v802 = vmul.f32 %v794, %v799
      %v803 = vmul.f32 %v795, %v801
      %805 = vset.pattern.permute.xlu0 0
      %806 = vperm.xlu0 %805, %v792
      %v807 = vpop.permute.xlu0 %806
      %810 = vset.pattern.permute.xlu0 0
      %811 = vperm.xlu0 %810, %v793
      %v812 = vpop.permute.xlu0 %811
      %v814 = vsub.f32 %v768, %v807
      %v815 = vsub.f32 %v770, %v807
      %v816 = vsub.f32 %v772, %v812
      %v817 = vsub.f32 %v774, %v812
      %v818 = vmul.f32 %v814, 1.442695
      %v819 = vpow.pop %v818
      %v820 = vmul.f32 %v815, 1.442695
      %v821 = vpow.pop %v820
      %v822 = vmul.f32 %v816, 1.442695
      %v823 = vpow.pop %v822
      %v824 = vmul.f32 %v817, 1.442695
      %v825 = vpow.pop %v824
      %v826 = vadd.f32 %v819, %v821
      %827 = vadd.xlane.f32.xlu0 %v826
      %v828 = vpop.xlane.xlu0 %827
      %v829 = vadd.f32 %v823, %v825
      %830 = vadd.xlane.f32.xlu0 %v829
      %v831 = vpop.xlane.xlu0 %830
      %v832 = vadd.f32 %v802, %v828
      %v833 = vadd.f32 %v803, %v831
      %vm834 = vcmask 7168
      %835 = vst.msk [vmem:[#allocation3] sm:$0xff] %vm834, %v832
      %836 = vst.msk [vmem:[#allocation3 + $0x8] sm:$0xff] %vm834, %v833
      %837 = vst.msk [vmem:[#allocation2] sm:$0xff] %vm834, %v792
      %838 = vst.msk [vmem:[#allocation2 + $0x8] sm:$0xff] %vm834, %v793
    $region45: #{tpu_custom_call.1} parent=1 // pred_fallthru
      _
    // Predicated region
    $region46: #{tpu_custom_call.1} parent=1 // pred_check
      %p839 = pneg %p67
    $region47: #{tpu_custom_call.1} parent=1 // pred_check_branch
      %841 = sbr.rel (%p839) target = $region49
    $region48: #{tpu_custom_call.1} parent=1 // pred_region
      %v842 = vlaneseq
      %v843 = vand.u32 %v842, 127
      %v844 = vadd.s32 %v843, 128
      %s845 = smul.u32 0, 256
      %v846 = vstv %s845
      %v847 = vadd.s32 %v843, %v846
      %v848 = vadd.s32 %v844, %v846
      %vm849 = vcmp.lt.s32.totalorder %v847, 160
      %vm850 = vcmp.lt.s32.totalorder %v848, 160
      %v851 = vsel %vm849, %v768, -1e+30
      %v852 = vsel %vm850, %v770, -1e+30
      %v853 = vsel %vm849, %v772, -1e+30
      %v854 = vsel %vm850, %v774, -1e+30
      %v855 = vld [vmem:[#allocation2] sm:$0xff]
      %v856 = vld [vmem:[#allocation2 + $0x8] sm:$0xff]
      %v857 = vmax.f32 %v851, %v852
      %858 = vmax.xlane.f32.xlu0 %v857
      %v859 = vpop.xlane.xlu0 %858
      %v860 = vmax.f32 %v853, %v854
      %861 = vmax.xlane.f32.xlu0 %v860
      %v862 = vpop.xlane.xlu0 %861
      %v863 = vmax.f32 %v855, %v859
      %v864 = vmax.f32 %v856, %v862
      %v865 = vld [vmem:[#allocation3] sm:$0xff]
      %v866 = vld [vmem:[#allocation3 + $0x8] sm:$0xff]
      %v867 = vsub.f32 %v855, %v863
      %v868 = vsub.f32 %v856, %v864
      %v869 = vmul.f32 %v867, 1.442695
      %v870 = vpow.pop %v869
      %v871 = vmul.f32 %v868, 1.442695
      %v872 = vpow.pop %v871
      %v873 = vmul.f32 %v865, %v870
      %v874 = vmul.f32 %v866, %v872
      %876 = vset.pattern.permute.xlu0 0
      %877 = vperm.xlu0 %876, %v863
      %v878 = vpop.permute.xlu0 %877
      %881 = vset.pattern.permute.xlu0 0
      %882 = vperm.xlu0 %881, %v864
      %v883 = vpop.permute.xlu0 %882
      %v885 = vsub.f32 %v851, %v878
      %v886 = vsub.f32 %v852, %v878
      %v887 = vsub.f32 %v853, %v883
      %v888 = vsub.f32 %v854, %v883
      %v889 = vmul.f32 %v885, 1.442695
      %v890 = vpow.pop %v889
      %v891 = vmul.f32 %v886, 1.442695
      %v892 = vpow.pop %v891
      %v893 = vmul.f32 %v887, 1.442695
      %v894 = vpow.pop %v893
      %v895 = vmul.f32 %v888, 1.442695
      %v896 = vpow.pop %v895
      %v897 = vadd.f32 %v890, %v892
      %898 = vadd.xlane.f32.xlu0 %v897
      %v899 = vpop.xlane.xlu0 %898
      %v900 = vadd.f32 %v894, %v896
      %901 = vadd.xlane.f32.xlu0 %v900
      %v902 = vpop.xlane.xlu0 %901
      %v903 = vadd.f32 %v873, %v899
      %v904 = vadd.f32 %v874, %v902
      %vm905 = vcmask 7168
      %906 = vst.msk [vmem:[#allocation3] sm:$0xff] %vm905, %v903
      %907 = vst.msk [vmem:[#allocation3 + $0x8] sm:$0xff] %vm905, %v904
      %908 = vst.msk [vmem:[#allocation2] sm:$0xff] %vm905, %v863
      %909 = vst.msk [vmem:[#allocation2 + $0x8] sm:$0xff] %vm905, %v864
      %v910 = vld [vmem:[#allocation2] sm:$0xff]
      %v911 = vld [vmem:[#allocation2 + $0x8] sm:$0xff]
      %v912 = vld [vmem:[#allocation3] sm:$0xff]
      %v913 = vld [vmem:[#allocation3 + $0x8] sm:$0xff]
      %v914 = vlog2.pop %v912
      %v915 = vmul.f32 %v914, 0.6931472
      %v916 = vlog2.pop %v913
      %v917 = vmul.f32 %v916, 0.6931472
      %v918 = vadd.f32 %v910, %v915
      %v919 = vadd.f32 %v911, %v917
      %920 = vst.msk [vmem:[%s7] sm:$0xff] %vm905, %v918
      %921 = vst.msk [vmem:[%s7 + $0x8] sm:$0xff] %vm905, %v919
    $region49: #{tpu_custom_call.1} parent=1 // pred_fallthru
      _
    // Predicated region
    $region50: #{tpu_custom_call.1} parent=1 // pred_check
      _
    $region51: #{tpu_custom_call.1} parent=1 // pred_check_branch
      %923 = sbr.rel (0) target = $region53
    $region52: #{tpu_custom_call.1} parent=1 // pred_region
      %s925 = ssub.s32 512, 512
      %926 = vsyncadd [#allocation7], %s925
      %s927 = sshll.u32 [#allocation11], 4
      %s928 = int_to_ptr.vmem [resolvable:$true] %s927
      %933 = dma.vmem_to_hbm [thread:$0]  %s928, 512, %s6, [#allocation7], 256, 256, 16
    $region53: #{tpu_custom_call.1} parent=1 // pred_fallthru
      _
    // Predicated region
    $region54: #{tpu_custom_call.1} parent=1 // pred_check
      _
    $region55: #{tpu_custom_call.1} parent=1 // pred_check_branch
      %935 = sbr.rel (0) target = $region57
    $region56: #{tpu_custom_call.1} parent=1 // pred_region
      _
    $region57: #{tpu_custom_call.1} parent=1 // pred_fallthru
      _
    // Predicated region
    $region58: #{tpu_custom_call.1} parent=1 // pred_check
      _
    $region59: #{tpu_custom_call.1} parent=1 // pred_check_branch
      %937 = sbr.rel (0) target = $region61
    $region60: #{tpu_custom_call.1} parent=1 // pred_region
      _
    $region61: #{tpu_custom_call.1} parent=1 // pred_fallthru
      _
    // Predicated region
    $region62: #{tpu_custom_call.1} parent=1 // pred_check
      _
    $region63: #{tpu_custom_call.1} parent=1 // pred_check_branch
      %939 = sbr.rel (0) target = $region65
    $region64: #{tpu_custom_call.1} parent=1 // pred_region
      %940 = dma.done [#allocation7], 512
    $region65: #{tpu_custom_call.1} parent=1 // pred_fallthru
      _
    // Predicated region
    $region66: #{tpu_custom_call.1} parent=1 // pred_check
      _
    $region67: #{tpu_custom_call.1} parent=1 // pred_check_branch
      %942 = sbr.rel (0) target = $region69
    $region68: #{tpu_custom_call.1} parent=1 // pred_region
      _
    $region69: #{tpu_custom_call.1} parent=1 // pred_fallthru
      _
    // Predicated region
    $region70: #{tpu_custom_call.1} parent=1 // pred_check
      _
    $region71: #{tpu_custom_call.1} parent=1 // pred_check_branch
      %944 = sbr.rel (0) target = $region73
    $region72: #{tpu_custom_call.1} parent=1 // pred_region
      _
    $region73: #{tpu_custom_call.1} parent=1 // pred_fallthru
      _
    %945 = vsyncpa [#allocation6], 1
    %946 = vsyncpa [#allocation9], 1
    %947 = vsyncpa [#allocation7], 1

// kernel: tpu_custom_call.1
$region0: #{tpu_custom_call.1}
  #allocation0 [shape = 'u32[]', space=smem, size = 0x4, offset = 0x4, fixed_abs, tag = 'smem constant byte address 0x4 - core index']
  #allocation1 [shape = 'u32[144,128]{1,0:T(1,128)}', space=vmem, size = 0x12000, scoped, tag = 'internal scratch']
  #allocation2 [shape = 'f32[16,1]{1,0:T(8,128)}', space=vmem, size = 0x2000, scoped, tag = 'scratch operand']
  #allocation3 [shape = 'f32[16,1]{1,0:T(8,128)}', space=vmem, size = 0x2000, scoped, tag = 'scratch operand']
  #allocation4 [shape = 'bf16[16,128]{1,0:T(16,128)(2,1)}', space=vmem, size = 0x1000, scoped, tag = 'scratch operand']
  %s0 = inlined_call_operand.vmem [shape: bf16[16,256], index: 0, kind: input, shape index: {}]
  %s1 = inlined_call_operand.vmem [shape: f32[16,128], index: 1, kind: input, shape index: {}, may-alias: {1,8}]
  %s2 = inlined_call_operand.hbm [shape: bf16[256,512], index: 2, kind: input, shape index: {}]
  %s3 = inlined_call_operand.vmem [shape: f32[1,512], index: 3, kind: input, shape index: {}]
  %s4 = inlined_call_operand.hbm [shape: bf16[128,256], index: 4, kind: input, shape index: {}]
  %s5 = inlined_call_operand.hbm [shape: f32[1,256], index: 5, kind: input, shape index: {}]
  %s6 = inlined_call_operand.hbm [shape: f32[16,256], index: 6, kind: output, shape index: {0}]
  %s7 = inlined_call_operand.vmem [shape: f32[16,1], index: 7, kind: output, shape index: {1}]
  %s8 = inlined_call_operand.vmem [shape: f32[16,128], index: 8, kind: output, shape index: {2}, may-alias: {1,8}]
  %9 = xla_tuple %s6, %s7, %s8
  %s10 = sld [smem:[#allocation0]]
  $region74: #{tpu_custom_call.1} parent=0
    _
  %s12 = ssub.s32 1, %s10
  %s13 = scalar_select 0, %s12, %s10
  $region1: #{tpu_custom_call.1} parent=0
    #allocation5 [shape = 'u8[262144]{0}', space=vmem, size = 0x40000, scoped, tag = 'input window, operand 2, single buffered']
    #allocation6 [shape = 's32[1]{0}', space=sflag, size = 0x4, scoped, tag = 'scoped memory for tpu_custom_call.1']
    #allocation7 [shape = 's32[1]{0}', space=sflag, size = 0x4, scoped, tag = 'scoped memory for tpu_custom_call.1']
    #allocation8 [shape = 'u8[65536]{0}', space=vmem, size = 0x10000, scoped, tag = 'input window, operand 4, single buffered']
    #allocation9 [shape = 's32[1]{0}', space=sflag, size = 0x4, scoped, tag = 'scoped memory for tpu_custom_call.1']
    #allocation10 [shape = 'u8[1024]{0}', space=vmem, size = 0x400, scoped, tag = 'input window, operand 5, single buffered']
    #allocation11 [shape = 'u8[16384]{0}', space=vmem, size = 0x4000, scoped, tag = 'output window, operand 0, single buffered']
    %14 = vsyncpa [#allocation6], 0
    %15 = vsyncpa [#allocation9], 0
    %16 = vsyncpa [#allocation7], 0
    // Predicated region
    $region2: #{tpu_custom_call.1} parent=1 // pred_check
      _
    $region3: #{tpu_custom_call.1} parent=1 // pred_check_branch
      %18 = sbr.rel (0) target = $region5
    $region4: #{tpu_custom_call.1} parent=1 // pred_region
      _
    $region5: #{tpu_custom_call.1} parent=1 // pred_fallthru
      _
    // Predicated region
    $region6: #{tpu_custom_call.1} parent=1 // pred_check
      _
    $region7: #{tpu_custom_call.1} parent=1 // pred_check_branch
      %20 = sbr.rel (0) target = $region9
    $region8: #{tpu_custom_call.1} parent=1 // pred_region
      _
    $region9: #{tpu_custom_call.1} parent=1 // pred_fallthru
      _
    // Predicated region
    $region10: #{tpu_custom_call.1} parent=1 // pred_check
      _
    $region11: #{tpu_custom_call.1} parent=1 // pred_check_branch
      %22 = sbr.rel (0) target = $region13
    $region12: #{tpu_custom_call.1} parent=1 // pred_region
      %s24 = ssub.s32 8192, 8192
      %25 = vsyncadd [#allocation6], %s24
      %s26 = sshll.u32 [#allocation5], 4
      %s27 = int_to_ptr.vmem [resolvable:$true] %s26
      %32 = dma.hbm_to_vmem [thread:$0]  %s2, 8192, %s27, [#allocation6], 256, 256, 16
    $region13: #{tpu_custom_call.1} parent=1 // pred_fallthru
      _
    // Predicated region
    $region14: #{tpu_custom_call.1} parent=1 // pred_check
      _
    $region15: #{tpu_custom_call.1} parent=1 // pred_check_branch
      %34 = sbr.rel (0) target = $region17
    $region16: #{tpu_custom_call.1} parent=1 // pred_region
      _
    $region17: #{tpu_custom_call.1} parent=1 // pred_fallthru
      _
    // Predicated region
    $region18: #{tpu_custom_call.1} parent=1 // pred_check
      _
    $region19: #{tpu_custom_call.1} parent=1 // pred_check_branch
      %36 = sbr.rel (0) target = $region21
    $region20: #{tpu_custom_call.1} parent=1 // pred_region
      %s38 = ssub.s32 2048, 2048
      %39 = vsyncadd [#allocation9], %s38
      %s40 = sshll.u32 [#allocation8], 4
      %s41 = int_to_ptr.vmem [resolvable:$true] %s40
      %46 = dma.hbm_to_vmem [thread:$0]  %s4, 2048, %s41, [#allocation9], 128, 128, 8
    $region21: #{tpu_custom_call.1} parent=1 // pred_fallthru
      _
    // Predicated region
    $region22: #{tpu_custom_call.1} parent=1 // pred_check
      _
    $region23: #{tpu_custom_call.1} parent=1 // pred_check_branch
      %48 = sbr.rel (0) target = $region25
    $region24: #{tpu_custom_call.1} parent=1 // pred_region
      %s50 = ssub.s32 32, 32
      %51 = vsyncadd [#allocation9], %s50
      %s53 = sshll.u32 [#allocation10], 4
      %s54 = int_to_ptr.vmem [resolvable:$true] %s53
      %56 = dma.hbm_to_vmem [thread:$0]  %s5, 32, %s54, [#allocation9]
    $region25: #{tpu_custom_call.1} parent=1 // pred_fallthru
      _
    // Predicated region
    $region26: #{tpu_custom_call.1} parent=1 // pred_check
      _
    $region27: #{tpu_custom_call.1} parent=1 // pred_check_branch
      %58 = sbr.rel (0) target = $region29
    $region28: #{tpu_custom_call.1} parent=1 // pred_region
      %59 = dma.done [#allocation6], 8192
    $region29: #{tpu_custom_call.1} parent=1 // pred_fallthru
      _
    // Predicated region
    $region30: #{tpu_custom_call.1} parent=1 // pred_check
      _
    $region31: #{tpu_custom_call.1} parent=1 // pred_check_branch
      %61 = sbr.rel (0) target = $region33
    $region32: #{tpu_custom_call.1} parent=1 // pred_region
      %62 = dma.done [#allocation9], 2048
    $region33: #{tpu_custom_call.1} parent=1 // pred_fallthru
      _
    // Predicated region
    $region34: #{tpu_custom_call.1} parent=1 // pred_check
      _
    $region35: #{tpu_custom_call.1} parent=1 // pred_check_branch
      %64 = sbr.rel (0) target = $region37
    $region36: #{tpu_custom_call.1} parent=1 // pred_region
      %65 = dma.done [#allocation9], 32
    $region37: #{tpu_custom_call.1} parent=1 // pred_fallthru
      _
    %p67 = scmp.eq.s32.totalorder 0, 0
    // Predicated region
    $region38: #{tpu_custom_call.1} parent=1 // pred_check
      %p68 = pneg %p67
    $region39: #{tpu_custom_call.1} parent=1 // pred_check_branch
      %70 = sbr.rel (%p68) target = $region41
    $region40: #{tpu_custom_call.1} parent=1 // pred_region
      %v71 = vld [vmem:[%s0] sm:$0xff]
      %v72 = vld [vmem:[%s0 + $0x8] sm:$0xff]
      %v73 = vld [vmem:[%s1] sm:$0xff]
      %v74 = vld [vmem:[%s1 + $0x8] sm:$0xff]
      %v75 = vld [vmem:[#allocation5] sm:$0xff]
      %v76 = vld [vmem:[#allocation5 + $0x8] sm:$0xff]
      %v77 = vld [vmem:[#allocation5 + $0x10] sm:$0xff]
      %v78 = vld [vmem:[#allocation5 + $0x18] sm:$0xff]
      %v79 = vld [vmem:[#allocation5 + $0x20] sm:$0xff]
      %v80 = vld [vmem:[#allocation5 + $0x28] sm:$0xff]
      %v81 = vld [vmem:[#allocation5 + $0x30] sm:$0xff]
      %v82 = vld [vmem:[#allocation5 + $0x38] sm:$0xff]
      %v83 = vld [vmem:[#allocation5 + $0x40] sm:$0xff]
      %v84 = vld [vmem:[#allocation5 + $0x48] sm:$0xff]
      %v85 = vld [vmem:[#allocation5 + $0x50] sm:$0xff]
      %v86 = vld [vmem:[#allocation5 + $0x58] sm:$0xff]
      %v87 = vld [vmem:[#allocation5 + $0x60] sm:$0xff]
      %v88 = vld [vmem:[#allocation5 + $0x68] sm:$0xff]
      %v89 = vld [vmem:[#allocation5 + $0x70] sm:$0xff]
      %v90 = vld [vmem:[#allocation5 + $0x78] sm:$0xff]
      %v91 = vld [vmem:[#allocation5 + $0x80] sm:$0xff]
      %v92 = vld [vmem:[#allocation5 + $0x88] sm:$0xff]
      %v93 = vld [vmem:[#allocation5 + $0x90] sm:$0xff]
      %v94 = vld [vmem:[#allocation5 + $0x98] sm:$0xff]
      %v95 = vld [vmem:[#allocation5 + $0xa0] sm:$0xff]
      %v96 = vld [vmem:[#allocation5 + $0xa8] sm:$0xff]
      %v97 = vld [vmem:[#allocation5 + $0xb0] sm:$0xff]
      %v98 = vld [vmem:[#allocation5 + $0xb8] sm:$0xff]
      %v99 = vld [vmem:[#allocation5 + $0xc0] sm:$0xff]
      %v100 = vld [vmem:[#allocation5 + $0xc8] sm:$0xff]
      %v101 = vld [vmem:[#allocation5 + $0xd0] sm:$0xff]
      %v102 = vld [vmem:[#allocation5 + $0xd8] sm:$0xff]
      %v103 = vld [vmem:[#allocation5 + $0xe0] sm:$0xff]
      %v104 = vld [vmem:[#allocation5 + $0xe8] sm:$0xff]
      %v105 = vld [vmem:[#allocation5 + $0xf0] sm:$0xff]
      %v106 = vld [vmem:[#allocation5 + $0xf8] sm:$0xff]
      %v107 = vld [vmem:[#allocation5 + $0x100] sm:$0xff]
      %v108 = vld [vmem:[#allocation5 + $0x108] sm:$0xff]
      %v109 = vld [vmem:[#allocation5 + $0x110] sm:$0xff]
      %v110 = vld [vmem:[#allocation5 + $0x118] sm:$0xff]
      %v111 = vld [vmem:[#allocation5 + $0x120] sm:$0xff]
      %v112 = vld [vmem:[#allocation5 + $0x128] sm:$0xff]
      %v113 = vld [vmem:[#allocation5 + $0x130] sm:$0xff]
      %v114 = vld [vmem:[#allocation5 + $0x138] sm:$0xff]
      %v115 = vld [vmem:[#allocation5 + $0x140] sm:$0xff]
      %v116 = vld [vmem:[#allocation5 + $0x148] sm:$0xff]
      %v117 = vld [vmem:[#allocation5 + $0x150] sm:$0xff]
      %v118 = vld [vmem:[#allocation5 + $0x158] sm:$0xff]
      %v119 = vld [vmem:[#allocation5 + $0x160] sm:$0xff]
      %v120 = vld [vmem:[#allocation5 + $0x168] sm:$0xff]
      %v121 = vld [vmem:[#allocation5 + $0x170] sm:$0xff]
      %v122 = vld [vmem:[#allocation5 + $0x178] sm:$0xff]
      %v123 = vld [vmem:[#allocation5 + $0x180] sm:$0xff]
      %v124 = vld [vmem:[#allocation5 + $0x188] sm:$0xff]
      %v125 = vld [vmem:[#allocation5 + $0x190] sm:$0xff]
      %v126 = vld [vmem:[#allocation5 + $0x198] sm:$0xff]
      %v127 = vld [vmem:[#allocation5 + $0x1a0] sm:$0xff]
      %v128 = vld [vmem:[#allocation5 + $0x1a8] sm:$0xff]
      %v129 = vld [vmem:[#allocation5 + $0x1b0] sm:$0xff]
      %v130 = vld [vmem:[#allocation5 + $0x1b8] sm:$0xff]
      %v131 = vld [vmem:[#allocation5 + $0x1c0] sm:$0xff]
      %v132 = vld [vmem:[#allocation5 + $0x1c8] sm:$0xff]
      %v133 = vld [vmem:[#allocation5 + $0x1d0] sm:$0xff]
      %v134 = vld [vmem:[#allocation5 + $0x1d8] sm:$0xff]
      %v135 = vld [vmem:[#allocation5 + $0x1e0] sm:$0xff]
      %v136 = vld [vmem:[#allocation5 + $0x1e8] sm:$0xff]
      %v137 = vld [vmem:[#allocation5 + $0x1f0] sm:$0xff]
      %v138 = vld [vmem:[#allocation5 + $0x1f8] sm:$0xff]
      %v139 = vld [vmem:[%s3] sm:$0xf]
      %v141 = vlaneseq
      %v142 = vshrl.u32 %v141, 7
      %v143 = vsub.s32 0, %v142
      %v144 = vrot.slane %v139, %v143
      %v145 = vlaneseq
      %v146 = vshrl.u32 %v145, 7
      %v147 = vsub.s32 1, %v146
      %v148 = vrot.slane %v139, %v147
      %v149 = vlaneseq
      %v150 = vshrl.u32 %v149, 7
      %v151 = vsub.s32 2, %v150
      %v152 = vrot.slane %v139, %v151
      %v153 = vlaneseq
      %v154 = vshrl.u32 %v153, 7
      %v155 = vsub.s32 3, %v154
      %v156 = vrot.slane %v139, %v155
      %v163 = vunpack.c.l.b16 %v71
      %v164 = vunpack.c.h.b16 %v71
      %v165 = vunpack.c.l.b16 %v72
      %v166 = vunpack.c.h.b16 %v72
      %v167 = vpack.c.b16 %v165, %v163
      %v168 = vpack.c.b16 %v166, %v164
      %v235 = vunpack.c.l.b16 %v75
      %v236 = vunpack.c.h.b16 %v75
      %v237 = vunpack.c.l.b16 %v76
      %v238 = vunpack.c.h.b16 %v76
      %v239 = vunpack.c.l.b16 %v77
      %v240 = vunpack.c.h.b16 %v77
      %v241 = vunpack.c.l.b16 %v78
      %v242 = vunpack.c.h.b16 %v78
      %v243 = vunpack.c.l.b16 %v79
      %v244 = vunpack.c.h.b16 %v79
      %v245 = vunpack.c.l.b16 %v80
      %v246 = vunpack.c.h.b16 %v80
      %v247 = vunpack.c.l.b16 %v81
      %v248 = vunpack.c.h.b16 %v81
      %v249 = vunpack.c.l.b16 %v82
      %v250 = vunpack.c.h.b16 %v82
      %v251 = vunpack.c.l.b16 %v83
      %v252 = vunpack.c.h.b16 %v83
      %v253 = vunpack.c.l.b16 %v84
      %v254 = vunpack.c.h.b16 %v84
      %v255 = vunpack.c.l.b16 %v85
      %v256 = vunpack.c.h.b16 %v85
      %v257 = vunpack.c.l.b16 %v86
      %v258 = vunpack.c.h.b16 %v86
      %v259 = vunpack.c.l.b16 %v87
      %v260 = vunpack.c.h.b16 %v87
      %v261 = vunpack.c.l.b16 %v88
      %v262 = vunpack.c.h.b16 %v88
      %v263 = vunpack.c.l.b16 %v89
      %v264 = vunpack.c.h.b16 %v89
      %v265 = vunpack.c.l.b16 %v90
      %v266 = vunpack.c.h.b16 %v90
      %v267 = vunpack.c.l.b16 %v91
      %v268 = vunpack.c.h.b16 %v91
      %v269 = vunpack.c.l.b16 %v92
      %v270 = vunpack.c.h.b16 %v92
      %v271 = vunpack.c.l.b16 %v93
      %v272 = vunpack.c.h.b16 %v93
      %v273 = vunpack.c.l.b16 %v94
      %v274 = vunpack.c.h.b16 %v94
      %v275 = vunpack.c.l.b16 %v95
      %v276 = vunpack.c.h.b16 %v95
      %v277 = vunpack.c.l.b16 %v96
      %v278 = vunpack.c.h.b16 %v96
      %v279 = vunpack.c.l.b16 %v97
      %v280 = vunpack.c.h.b16 %v97
      %v281 = vunpack.c.l.b16 %v98
      %v282 = vunpack.c.h.b16 %v98
      %v283 = vunpack.c.l.b16 %v99
      %v284 = vunpack.c.h.b16 %v99
      %v285 = vunpack.c.l.b16 %v100
      %v286 = vunpack.c.h.b16 %v100
      %v287 = vunpack.c.l.b16 %v101
      %v288 = vunpack.c.h.b16 %v101
      %v289 = vunpack.c.l.b16 %v102
      %v290 = vunpack.c.h.b16 %v102
      %v291 = vunpack.c.l.b16 %v103
      %v292 = vunpack.c.h.b16 %v103
      %v293 = vunpack.c.l.b16 %v104
      %v294 = vunpack.c.h.b16 %v104
      %v295 = vunpack.c.l.b16 %v105
      %v296 = vunpack.c.h.b16 %v105
      %v297 = vunpack.c.l.b16 %v106
      %v298 = vunpack.c.h.b16 %v106
      %v299 = vunpack.c.l.b16 %v107
      %v300 = vunpack.c.h.b16 %v107
      %v301 = vunpack.c.l.b16 %v108
      %v302 = vunpack.c.h.b16 %v108
      %v303 = vunpack.c.l.b16 %v109
      %v304 = vunpack.c.h.b16 %v109
      %v305 = vunpack.c.l.b16 %v110
      %v306 = vunpack.c.h.b16 %v110
      %v307 = vunpack.c.l.b16 %v111
      %v308 = vunpack.c.h.b16 %v111
      %v309 = vunpack.c.l.b16 %v112
      %v310 = vunpack.c.h.b16 %v112
      %v311 = vunpack.c.l.b16 %v113
      %v312 = vunpack.c.h.b16 %v113
      %v313 = vunpack.c.l.b16 %v114
      %v314 = vunpack.c.h.b16 %v114
      %v315 = vunpack.c.l.b16 %v115
      %v316 = vunpack.c.h.b16 %v115
      %v317 = vunpack.c.l.b16 %v116
      %v318 = vunpack.c.h.b16 %v116
      %v319 = vunpack.c.l.b16 %v117
      %v320 = vunpack.c.h.b16 %v117
      %v321 = vunpack.c.l.b16 %v118
      %v322 = vunpack.c.h.b16 %v118
      %v323 = vunpack.c.l.b16 %v119
      %v324 = vunpack.c.h.b16 %v119
      %v325 = vunpack.c.l.b16 %v120
      %v326 = vunpack.c.h.b16 %v120
      %v327 = vunpack.c.l.b16 %v121
      %v328 = vunpack.c.h.b16 %v121
      %v329 = vunpack.c.l.b16 %v122
      %v330 = vunpack.c.h.b16 %v122
      %v331 = vunpack.c.l.b16 %v123
      %v332 = vunpack.c.h.b16 %v123
      %v333 = vunpack.c.l.b16 %v124
      %v334 = vunpack.c.h.b16 %v124
      %v335 = vunpack.c.l.b16 %v125
      %v336 = vunpack.c.h.b16 %v125
      %v337 = vunpack.c.l.b16 %v126
      %v338 = vunpack.c.h.b16 %v126
      %v339 = vunpack.c.l.b16 %v127
      %v340 = vunpack.c.h.b16 %v127
      %v341 = vunpack.c.l.b16 %v128
      %v342 = vunpack.c.h.b16 %v128
      %v343 = vunpack.c.l.b16 %v129
      %v344 = vunpack.c.h.b16 %v129
      %v345 = vunpack.c.l.b16 %v130
      %v346 = vunpack.c.h.b16 %v130
      %v347 = vunpack.c.l.b16 %v131
      %v348 = vunpack.c.h.b16 %v131
      %v349 = vunpack.c.l.b16 %v132
      %v350 = vunpack.c.h.b16 %v132
      %v351 = vunpack.c.l.b16 %v133
      %v352 = vunpack.c.h.b16 %v133
      %v353 = vunpack.c.l.b16 %v134
      %v354 = vunpack.c.h.b16 %v134
      %v355 = vunpack.c.l.b16 %v135
      %v356 = vunpack.c.h.b16 %v135
      %v357 = vunpack.c.l.b16 %v136
      %v358 = vunpack.c.h.b16 %v136
      %v359 = vunpack.c.l.b16 %v137
      %v360 = vunpack.c.h.b16 %v137
      %v361 = vunpack.c.l.b16 %v138
      %v362 = vunpack.c.h.b16 %v138
      %v363 = vpack.c.b16 %v239, %v235
      %v364 = vpack.c.b16 %v240, %v236
      %v365 = vpack.c.b16 %v241, %v237
      %v366 = vpack.c.b16 %v242, %v238
      %v367 = vpack.c.b16 %v247, %v243
      %v368 = vpack.c.b16 %v248, %v244
      %v369 = vpack.c.b16 %v249, %v245
      %v370 = vpack.c.b16 %v250, %v246
      %v371 = vpack.c.b16 %v255, %v251
      %v372 = vpack.c.b16 %v256, %v252
      %v373 = vpack.c.b16 %v257, %v253
      %v374 = vpack.c.b16 %v258, %v254
      %v375 = vpack.c.b16 %v263, %v259
      %v376 = vpack.c.b16 %v264, %v260
      %v377 = vpack.c.b16 %v265, %v261
      %v378 = vpack.c.b16 %v266, %v262
      %v379 = vpack.c.b16 %v271, %v267
      %v380 = vpack.c.b16 %v272, %v268
      %v381 = vpack.c.b16 %v273, %v269
      %v382 = vpack.c.b16 %v274, %v270
      %v383 = vpack.c.b16 %v279, %v275
      %v384 = vpack.c.b16 %v280, %v276
      %v385 = vpack.c.b16 %v281, %v277
      %v386 = vpack.c.b16 %v282, %v278
      %v387 = vpack.c.b16 %v287, %v283
      %v388 = vpack.c.b16 %v288, %v284
      %v389 = vpack.c.b16 %v289, %v285
      %v390 = vpack.c.b16 %v290, %v286
      %v391 = vpack.c.b16 %v295, %v291
      %v392 = vpack.c.b16 %v296, %v292
      %v393 = vpack.c.b16 %v297, %v293
      %v394 = vpack.c.b16 %v298, %v294
      %v395 = vpack.c.b16 %v303, %v299
      %v396 = vpack.c.b16 %v304, %v300
      %v397 = vpack.c.b16 %v305, %v301
      %v398 = vpack.c.b16 %v306, %v302
      %v399 = vpack.c.b16 %v311, %v307
      %v400 = vpack.c.b16 %v312, %v308
      %v401 = vpack.c.b16 %v313, %v309
      %v402 = vpack.c.b16 %v314, %v310
      %v403 = vpack.c.b16 %v319, %v315
      %v404 = vpack.c.b16 %v320, %v316
      %v405 = vpack.c.b16 %v321, %v317
      %v406 = vpack.c.b16 %v322, %v318
      %v407 = vpack.c.b16 %v327, %v323
      %v408 = vpack.c.b16 %v328, %v324
      %v409 = vpack.c.b16 %v329, %v325
      %v410 = vpack.c.b16 %v330, %v326
      %v411 = vpack.c.b16 %v335, %v331
      %v412 = vpack.c.b16 %v336, %v332
      %v413 = vpack.c.b16 %v337, %v333
      %v414 = vpack.c.b16 %v338, %v334
      %v415 = vpack.c.b16 %v343, %v339
      %v416 = vpack.c.b16 %v344, %v340
      %v417 = vpack.c.b16 %v345, %v341
      %v418 = vpack.c.b16 %v346, %v342
      %v419 = vpack.c.b16 %v351, %v347
      %v420 = vpack.c.b16 %v352, %v348
      %v421 = vpack.c.b16 %v353, %v349
      %v422 = vpack.c.b16 %v354, %v350
      %v423 = vpack.c.b16 %v359, %v355
      %v424 = vpack.c.b16 %v360, %v356
      %v425 = vpack.c.b16 %v361, %v357
      %v426 = vpack.c.b16 %v362, %v358
      %491 = vmatprep.subr.bf16.mxu0 %v364
      %492 = vmatpush1.bf16.msra.mxu0 %v363
      %493 = vmatprep.subr.bf16.mxu0 %v368
      %494 = vmatpush1.bf16.msra.mxu0 %v367
      %495 = vmatprep.subr.bf16.mxu0 %v372
      %496 = vmatpush1.bf16.msra.mxu0 %v371
      %497 = vmatprep.subr.bf16.mxu0 %v376
      %498 = vmatpush1.bf16.msra.mxu0 %v375
      %499 = vmatprep.subr.bf16.mxu0 %v380
      %500 = vmatpush1.bf16.msra.mxu0 %v379
      %501 = vmatprep.subr.bf16.mxu0 %v384
      %502 = vmatpush1.bf16.msra.mxu0 %v383
      %503 = vmatprep.subr.bf16.mxu0 %v388
      %504 = vmatpush1.bf16.msra.mxu0 %v387
      %505 = vmatprep.subr.bf16.mxu0 %v392
      %506 = vmatpush1.bf16.msra.mxu0 %v391
      %507 = vmatprep.subr.bf16.mxu0 %v396
      %508 = vmatpush1.bf16.msra.mxu0 %v395
      %509 = vmatprep.subr.bf16.mxu0 %v400
      %510 = vmatpush1.bf16.msra.mxu0 %v399
      %511 = vmatprep.subr.bf16.mxu0 %v404
      %512 = vmatpush1.bf16.msra.mxu0 %v403
      %513 = vmatprep.subr.bf16.mxu0 %v408
      %514 = vmatpush1.bf16.msra.mxu0 %v407
      %515 = vmatprep.subr.bf16.mxu0 %v412
      %516 = vmatpush1.bf16.msra.mxu0 %v411
      %517 = vmatprep.subr.bf16.mxu0 %v416
      %518 = vmatpush1.bf16.msra.mxu0 %v415
      %519 = vmatprep.subr.bf16.mxu0 %v420
      %520 = vmatpush1.bf16.msra.mxu0 %v419
      %521 = vmatprep.subr.bf16.mxu0 %v424
      %522 = vmatpush1.bf16.msra.mxu0 %v423
      %523 = vmatprep.mubr.bf16.mxu0 %v168
      %524 = vmatmul.mubr.bf16.gmra.mrb[0].mxu0 %v167
      %v525 = vpop.f32.mrb[0].mxu0
      %v526 = vadd.f32 %v144, %v525
      %v527 = vpop.f32.mrb[0].mxu0
      %v528 = vadd.f32 %v148, %v527
      %v529 = vpop.f32.mrb[0].mxu0
      %v530 = vadd.f32 %v144, %v529
      %v531 = vpop.f32.mrb[0].mxu0
      %v532 = vadd.f32 %v148, %v531
      %533 = vdwg.mxu0
      %534 = vmatprep.subr.bf16.mxu0 %v366
      %535 = vmatpush1.bf16.msra.mxu0 %v365
      %536 = vmatprep.subr.bf16.mxu0 %v370
      %537 = vmatpush1.bf16.msra.mxu0 %v369
      %538 = vmatprep.subr.bf16.mxu0 %v374
      %539 = vmatpush1.bf16.msra.mxu0 %v373
      %540 = vmatprep.subr.bf16.mxu0 %v378
      %541 = vmatpush1.bf16.msra.mxu0 %v377
      %542 = vmatprep.subr.bf16.mxu0 %v382
      %543 = vmatpush1.bf16.msra.mxu0 %v381
      %544 = vmatprep.subr.bf16.mxu0 %v386
      %545 = vmatpush1.bf16.msra.mxu0 %v385
      %546 = vmatprep.subr.bf16.mxu0 %v390
      %547 = vmatpush1.bf16.msra.mxu0 %v389
      %548 = vmatprep.subr.bf16.mxu0 %v394
      %549 = vmatpush1.bf16.msra.mxu0 %v393
      %550 = vmatprep.subr.bf16.mxu0 %v398
      %551 = vmatpush1.bf16.msra.mxu0 %v397
      %552 = vmatprep.subr.bf16.mxu0 %v402
      %553 = vmatpush1.bf16.msra.mxu0 %v401
      %554 = vmatprep.subr.bf16.mxu0 %v406
      %555 = vmatpush1.bf16.msra.mxu0 %v405
      %556 = vmatprep.subr.bf16.mxu0 %v410
      %557 = vmatpush1.bf16.msra.mxu0 %v409
      %558 = vmatprep.subr.bf16.mxu0 %v414
      %559 = vmatpush1.bf16.msra.mxu0 %v413
      %560 = vmatprep.subr.bf16.mxu0 %v418
      %561 = vmatpush1.bf16.msra.mxu0 %v417
      %562 = vmatprep.subr.bf16.mxu0 %v422
      %563 = vmatpush1.bf16.msra.mxu0 %v421
      %564 = vmatprep.subr.bf16.mxu0 %v426
      %565 = vmatpush1.bf16.msra.mxu0 %v425
      %566 = vmatprep.mubr.bf16.mxu0 %v168
      %567 = vmatmul.mubr.bf16.gmra.mrb[0].mxu0 %v167
      %v568 = vpop.f32.mrb[0].mxu0
      %v569 = vadd.f32 %v152, %v568
      %v570 = vpop.f32.mrb[0].mxu0
      %v571 = vadd.f32 %v156, %v570
      %v572 = vpop.f32.mrb[0].mxu0
      %v573 = vadd.f32 %v152, %v572
      %v574 = vpop.f32.mrb[0].mxu0
      %v575 = vadd.f32 %v156, %v574
      %576 = vdwg.mxu0
      %v577 = vxor.u32 %v526, 2147483648
      %v578 = vxor.u32 %v530, 2147483648
      %v579 = vmul.f32 %v577, 1.442695
      %v580 = vpow.pop %v579
      %v581 = vmul.f32 %v578, 1.442695
      %v582 = vpow.pop %v581
      %v583 = vadd.f32 %v580, 1.0
      %v584 = vadd.f32 %v582, 1.0
      %v585 = vrcp.pop %v583
      %v586 = vmul.f32 1.0, %v585
      %v587 = vrcp.pop %v584
      %v588 = vmul.f32 1.0, %v587
      %v589 = vxor.u32 %v528, 2147483648
      %v590 = vxor.u32 %v532, 2147483648
      %v591 = vmul.f32 %v589, 1.442695
      %v592 = vpow.pop %v591
      %v593 = vmul.f32 %v590, 1.442695
      %v594 = vpow.pop %v593
      %v595 = vadd.f32 %v592, 1.0
      %v596 = vadd.f32 %v594, 1.0
      %v597 = vrcp.pop %v595
      %v598 = vmul.f32 1.0, %v597
      %v599 = vrcp.pop %v596
      %v600 = vmul.f32 1.0, %v599
      %v601 = vmul.f32 %v586, %v571
      %v602 = vmul.f32 %v588, %v575
      %v603 = vadd.f32 %v569, %v601
      %v604 = vadd.f32 %v573, %v602
      %v605 = vtanh.pop %v603
      %v606 = vtanh.pop %v604
      %v607 = vsub.f32 1.0, %v598
      %v608 = vsub.f32 1.0, %v600
      %v609 = vmul.f32 %v607, %v605
      %v610 = vmul.f32 %v608, %v606
      %v611 = vmul.f32 %v598, %v73
      %v612 = vmul.f32 %v600, %v74
      %v613 = vadd.f32 %v609, %v611
      %v614 = vadd.f32 %v610, %v612
      %615 = vst [vmem:[%s8] sm:$0xff] %v613
      %616 = vst [vmem:[%s8 + $0x8] sm:$0xff] %v614
      %v617 = vpack.c.bf16 %v614, %v613
      %618 = vst [vmem:[#allocation4] sm:$0xff] %v617
      %vm619 = vcmask 7168
      %620 = vst.msk [vmem:[#allocation2] sm:$0xff] %vm619, -1e+30
      %621 = vst.msk [vmem:[#allocation2 + $0x8] sm:$0xff] %vm619, -1e+30
      %622 = vst.msk [vmem:[#allocation3] sm:$0xff] %vm619, 0.0
      %623 = vst.msk [vmem:[#allocation3 + $0x8] sm:$0xff] %vm619, 0.0
    $region41: #{tpu_custom_call.1} parent=1 // pred_fallthru
      _
    %v624 = vld [vmem:[#allocation4] sm:$0xff]
    %v625 = vld [vmem:[#allocation8] sm:$0xff]
    %v626 = vld [vmem:[#allocation8 + $0x8] sm:$0xff]
    %v627 = vld [vmem:[#allocation8 + $0x10] sm:$0xff]
    %v628 = vld [vmem:[#allocation8 + $0x18] sm:$0xff]
    %v629 = vld [vmem:[#allocation8 + $0x20] sm:$0xff]
    %v630 = vld [vmem:[#allocation8 + $0x28] sm:$0xff]
    %v631 = vld [vmem:[#allocation8 + $0x30] sm:$0xff]
    %v632 = vld [vmem:[#allocation8 + $0x38] sm:$0xff]
    %v633 = vld [vmem:[#allocation8 + $0x40] sm:$0xff]
    %v634 = vld [vmem:[#allocation8 + $0x48] sm:$0xff]
    %v635 = vld [vmem:[#allocation8 + $0x50] sm:$0xff]
    %v636 = vld [vmem:[#allocation8 + $0x58] sm:$0xff]
    %v637 = vld [vmem:[#allocation8 + $0x60] sm:$0xff]
    %v638 = vld [vmem:[#allocation8 + $0x68] sm:$0xff]
    %v639 = vld [vmem:[#allocation8 + $0x70] sm:$0xff]
    %v640 = vld [vmem:[#allocation8 + $0x78] sm:$0xff]
    %v641 = vld [vmem:[#allocation10] sm:$0x3]
    %v643 = vlaneseq
    %v644 = vshrl.u32 %v643, 7
    %v645 = vsub.s32 0, %v644
    %v646 = vrot.slane %v641, %v645
    %v647 = vlaneseq
    %v648 = vshrl.u32 %v647, 7
    %v649 = vsub.s32 1, %v648
    %v650 = vrot.slane %v641, %v649
    %v669 = vunpack.c.l.b16 %v625
    %v670 = vunpack.c.h.b16 %v625
    %v671 = vunpack.c.l.b16 %v626
    %v672 = vunpack.c.h.b16 %v626
    %v673 = vunpack.c.l.b16 %v627
    %v674 = vunpack.c.h.b16 %v627
    %v675 = vunpack.c.l.b16 %v628
    %v676 = vunpack.c.h.b16 %v628
    %v677 = vunpack.c.l.b16 %v629
    %v678 = vunpack.c.h.b16 %v629
    %v679 = vunpack.c.l.b16 %v630
    %v680 = vunpack.c.h.b16 %v630
    %v681 = vunpack.c.l.b16 %v631
    %v682 = vunpack.c.h.b16 %v631
    %v683 = vunpack.c.l.b16 %v632
    %v684 = vunpack.c.h.b16 %v632
    %v685 = vunpack.c.l.b16 %v633
    %v686 = vunpack.c.h.b16 %v633
    %v687 = vunpack.c.l.b16 %v634
    %v688 = vunpack.c.h.b16 %v634
    %v689 = vunpack.c.l.b16 %v635
    %v690 = vunpack.c.h.b16 %v635
    %v691 = vunpack.c.l.b16 %v636
    %v692 = vunpack.c.h.b16 %v636
    %v693 = vunpack.c.l.b16 %v637
    %v694 = vunpack.c.h.b16 %v637
    %v695 = vunpack.c.l.b16 %v638
    %v696 = vunpack.c.h.b16 %v638
    %v697 = vunpack.c.l.b16 %v639
    %v698 = vunpack.c.h.b16 %v639
    %v699 = vunpack.c.l.b16 %v640
    %v700 = vunpack.c.h.b16 %v640
    %v701 = vpack.c.b16 %v671, %v669
    %v702 = vpack.c.b16 %v672, %v670
    %v703 = vpack.c.b16 %v675, %v673
    %v704 = vpack.c.b16 %v676, %v674
    %v705 = vpack.c.b16 %v679, %v677
    %v706 = vpack.c.b16 %v680, %v678
    %v707 = vpack.c.b16 %v683, %v681
    %v708 = vpack.c.b16 %v684, %v682
    %v709 = vpack.c.b16 %v687, %v685
    %v710 = vpack.c.b16 %v688, %v686
    %v711 = vpack.c.b16 %v691, %v689
    %v712 = vpack.c.b16 %v692, %v690
    %v713 = vpack.c.b16 %v695, %v693
    %v714 = vpack.c.b16 %v696, %v694
    %v715 = vpack.c.b16 %v699, %v697
    %v716 = vpack.c.b16 %v700, %v698
    %733 = vmatprep.subr.bf16.mxu0 %v702
    %734 = vmatpush1.bf16.msra.mxu0 %v701
    %735 = vmatprep.subr.bf16.mxu0 %v704
    %736 = vmatpush1.bf16.msra.mxu0 %v703
    %737 = vmatprep.subr.bf16.mxu0 %v706
    %738 = vmatpush1.bf16.msra.mxu0 %v705
    %739 = vmatprep.subr.bf16.mxu0 %v708
    %740 = vmatpush1.bf16.msra.mxu0 %v707
    %741 = vmatprep.subr.bf16.mxu0 %v710
    %742 = vmatpush1.bf16.msra.mxu0 %v709
    %743 = vmatprep.subr.bf16.mxu0 %v712
    %744 = vmatpush1.bf16.msra.mxu0 %v711
    %745 = vmatprep.subr.bf16.mxu0 %v714
    %746 = vmatpush1.bf16.msra.mxu0 %v713
    %747 = vmatprep.subr.bf16.mxu0 %v716
    %748 = vmatpush1.bf16.msra.mxu0 %v715
    %749 = vmatprep.subr.bf16.mxu0 0
    %750 = vmatpush1.bf16.msra.mxu0 0
    %751 = vmatprep.subr.bf16.mxu0 0
    %752 = vmatpush1.bf16.msra.mxu0 0
    %753 = vmatprep.subr.bf16.mxu0 0
    %754 = vmatpush1.bf16.msra.mxu0 0
    %755 = vmatprep.subr.bf16.mxu0 0
    %756 = vmatpush1.bf16.msra.mxu0 0
    %757 = vmatprep.subr.bf16.mxu0 0
    %758 = vmatpush1.bf16.msra.mxu0 0
    %759 = vmatprep.subr.bf16.mxu0 0
    %760 = vmatpush1.bf16.msra.mxu0 0
    %761 = vmatprep.subr.bf16.mxu0 0
    %762 = vmatpush1.bf16.msra.mxu0 0
    %763 = vmatprep.subr.bf16.mxu0 0
    %764 = vmatpush1.bf16.msra.mxu0 0
    %765 = vmatprep.mubr.bf16.mxu0 0
    %766 = vmatmul.mubr.bf16.gmra.mrb[0].mxu0 %v624
    %v767 = vpop.f32.mrb[0].mxu0
    %v768 = vadd.f32 %v646, %v767
    %v769 = vpop.f32.mrb[0].mxu0
    %v770 = vadd.f32 %v650, %v769
    %v771 = vpop.f32.mrb[0].mxu0
    %v772 = vadd.f32 %v646, %v771
    %v773 = vpop.f32.mrb[0].mxu0
    %v774 = vadd.f32 %v650, %v773
    %775 = vdwg.mxu0
    %776 = vst [vmem:[#allocation11] sm:$0xff] %v768
    %777 = vst [vmem:[#allocation11 + $0x8] sm:$0xff] %v770
    %778 = vst [vmem:[#allocation11 + $0x10] sm:$0xff] %v772
    %779 = vst [vmem:[#allocation11 + $0x18] sm:$0xff] %v774
    %p780 = scmp.ne.s32.totalorder 0, 0
    // Predicated region
    $region42: #{tpu_custom_call.1} parent=1 // pred_check
      %p781 = pneg %p780
    $region43: #{tpu_custom_call.1} parent=1 // pred_check_branch
      %783 = sbr.rel (%p781) target = $region45
    $region44: #{tpu_custom_call.1} parent=1 // pred_region
      %v784 = vld [vmem:[#allocation2] sm:$0xff]
      %v785 = vld [vmem:[#allocation2 + $0x8] sm:$0xff]
      %v786 = vmax.f32 %v768, %v770
      %787 = vmax.xlane.f32.xlu0 %v786
      %v788 = vpop.xlane.xlu0 %787
      %v789 = vmax.f32 %v772, %v774
      %790 = vmax.xlane.f32.xlu0 %v789
      %v791 = vpop.xlane.xlu0 %790
      %v792 = vmax.f32 %v784, %v788
      %v793 = vmax.f32 %v785, %v791
      %v794 = vld [vmem:[#allocation3] sm:$0xff]
      %v795 = vld [vmem:[#allocation3 + $0x8] sm:$0xff]
      %v796 = vsub.f32 %v784, %v792
      %v797 = vsub.f32 %v785, %v793
      %v798 = vmul.f32 %v796, 1.442695
      %v799 = vpow.pop %v798
      %v800 = vmul.f32 %v797, 1.442695
      %v801 = vpow.pop %v800
      %v802 = vmul.f32 %v794, %v799
      %v803 = vmul.f32 %v795, %v801
      %805 = vset.pattern.permute.xlu0 0
      %806 = vperm.xlu0 %805, %v792
      %v807 = vpop.permute.xlu0 %806
      %810 = vset.pattern.permute.xlu0 0
      %811 = vperm.xlu0 %810, %v793
      %v812 = vpop.permute.xlu0 %811
      %v814 = vsub.f32 %v768, %v807
      %v815 = vsub.f32 %v770, %v807
      %v816 = vsub.f32 %v772, %v812
      %v817 = vsub.f32 %v774, %v812
      %v818 = vmul.f32 %v814, 1.442695
      %v819 = vpow.pop %v818
      %v820 = vmul.f32 %v815, 1.442695
      %v821 = vpow.pop %v820
      %v822 = vmul.f32 %v816, 1.442695
      %v823 = vpow.pop %v822
      %v824 = vmul.f32 %v817, 1.442695
      %v825 = vpow.pop %v824
      %v826 = vadd.f32 %v819, %v821
      %827 = vadd.xlane.f32.xlu0 %v826
      %v828 = vpop.xlane.xlu0 %827
      %v829 = vadd.f32 %v823, %v825
      %830 = vadd.xlane.f32.xlu0 %v829
      %v831 = vpop.xlane.xlu0 %830
      %v832 = vadd.f32 %v802, %v828
      %v833 = vadd.f32 %v803, %v831
      %vm834 = vcmask 7168
      %835 = vst.msk [vmem:[#allocation3] sm:$0xff] %vm834, %v832
      %836 = vst.msk [vmem:[#allocation3 + $0x8] sm:$0xff] %vm834, %v833
      %837 = vst.msk [vmem:[#allocation2] sm:$0xff] %vm834, %v792
      %838 = vst.msk [vmem:[#allocation2 + $0x8] sm:$0xff] %vm834, %v793
    $region45: #{tpu_custom_call.1} parent=1 // pred_fallthru
      _
    // Predicated region
    $region46: #{tpu_custom_call.1} parent=1 // pred_check
      %p839 = pneg %p67
    $region47: #{tpu_custom_call.1} parent=1 // pred_check_branch
      %841 = sbr.rel (%p839) target = $region49
    $region48: #{tpu_custom_call.1} parent=1 // pred_region
      %v842 = vlaneseq
      %v843 = vand.u32 %v842, 127
      %v844 = vadd.s32 %v843, 128
      %s845 = smul.u32 0, 256
      %v846 = vstv %s845
      %v847 = vadd.s32 %v843, %v846
      %v848 = vadd.s32 %v844, %v846
      %vm849 = vcmp.lt.s32.totalorder %v847, 160
      %vm850 = vcmp.lt.s32.totalorder %v848, 160
      %v851 = vsel %vm849, %v768, -1e+30
      %v852 = vsel %vm850, %v770, -1e+30
      %v853 = vsel %vm849, %v772, -1e+30
      %v854 = vsel %vm850, %v774, -1e+30
      %v855 = vld [vmem:[#allocation2] sm:$0xff]
      %v856 = vld [vmem:[#allocation2 + $0x8] sm:$0xff]
      %v857 = vmax.f32 %v851, %v852
      %858 = vmax.xlane.f32.xlu0 %v857
      %v859 = vpop.xlane.xlu0 %858
      %v860 = vmax.f32 %v853, %v854
      %861 = vmax.xlane.f32.xlu0 %v860
      %v862 = vpop.xlane.xlu0 %861
      %v863 = vmax.f32 %v855, %v859
      %v864 = vmax.f32 %v856, %v862
      %v865 = vld [vmem:[#allocation3] sm:$0xff]
      %v866 = vld [vmem:[#allocation3 + $0x8] sm:$0xff]
      %v867 = vsub.f32 %v855, %v863
      %v868 = vsub.f32 %v856, %v864
      %v869 = vmul.f32 %v867, 1.442695
      %v870 = vpow.pop %v869
      %v871 = vmul.f32 %v868, 1.442695
      %v872 = vpow.pop %v871
      %v873 = vmul.f32 %v865, %v870
      %v874 = vmul.f32 %v866, %v872
      %876 = vset.pattern.permute.xlu0 0
      %877 = vperm.xlu0 %876, %v863
      %v878 = vpop.permute.xlu0 %877
      %881 = vset.pattern.permute.xlu0 0
      %882 = vperm.xlu0 %881, %v864
      %v883 = vpop.permute.xlu0 %882
      %v885 = vsub.f32 %v851, %v878
      %v886 = vsub.f32 %v852, %v878
      %v887 = vsub.f32 %v853, %v883
      %v888 = vsub.f32 %v854, %v883
      %v889 = vmul.f32 %v885, 1.442695
      %v890 = vpow.pop %v889
      %v891 = vmul.f32 %v886, 1.442695
      %v892 = vpow.pop %v891
      %v893 = vmul.f32 %v887, 1.442695
      %v894 = vpow.pop %v893
      %v895 = vmul.f32 %v888, 1.442695
      %v896 = vpow.pop %v895
      %v897 = vadd.f32 %v890, %v892
      %898 = vadd.xlane.f32.xlu0 %v897
      %v899 = vpop.xlane.xlu0 %898
      %v900 = vadd.f32 %v894, %v896
      %901 = vadd.xlane.f32.xlu0 %v900
      %v902 = vpop.xlane.xlu0 %901
      %v903 = vadd.f32 %v873, %v899
      %v904 = vadd.f32 %v874, %v902
      %vm905 = vcmask 7168
      %906 = vst.msk [vmem:[#allocation3] sm:$0xff] %vm905, %v903
      %907 = vst.msk [vmem:[#allocation3 + $0x8] sm:$0xff] %vm905, %v904
      %908 = vst.msk [vmem:[#allocation2] sm:$0xff] %vm905, %v863
      %909 = vst.msk [vmem:[#allocation2 + $0x8] sm:$0xff] %vm905, %v864
      %v910 = vld [vmem:[#allocation2] sm:$0xff]
      %v911 = vld [vmem:[#allocation2 + $0x8] sm:$0xff]
      %v912 = vld [vmem:[#allocation3] sm:$0xff]
      %v913 = vld [vmem:[#allocation3 + $0x8] sm:$0xff]
      %v914 = vlog2.pop %v912
      %v915 = vmul.f32 %v914, 0.6931472
      %v916 = vlog2.pop %v913
      %v917 = vmul.f32 %v916, 0.6931472
      %v918 = vadd.f32 %v910, %v915
      %v919 = vadd.f32 %v911, %v917
      %920 = vst.msk [vmem:[%s7] sm:$0xff] %vm905, %v918
      %921 = vst.msk [vmem:[%s7 + $0x8] sm:$0xff] %vm905, %v919
    $region49: #{tpu_custom_call.1} parent=1 // pred_fallthru
      _
    // Predicated region
    $region50: #{tpu_custom_call.1} parent=1 // pred_check
      _
    $region51: #{tpu_custom_call.1} parent=1 // pred_check_branch
      %923 = sbr.rel (0) target = $region53
    $region52: #{tpu_custom_call.1} parent=1 // pred_region
      %s925 = ssub.s32 512, 512
      %926 = vsyncadd [#allocation7], %s925
      %s927 = sshll.u32 [#allocation11], 4
      %s928 = int_to_ptr.vmem [resolvable:$true] %s927
      %933 = dma.vmem_to_hbm [thread:$0]  %s928, 512, %s6, [#allocation7], 256, 256, 16
    $region53: #{tpu_custom_call.1} parent=1 // pred_fallthru
      _
    // Predicated region
    $region54: #{tpu_custom_call.1} parent=1 // pred_check
      _
    $region55: #{tpu_custom_call.1} parent=1 // pred_check_branch
      %935 = sbr.rel (0) target = $region57
    $region56: #{tpu_custom_call.1} parent=1 // pred_region
      _
    $region57: #{tpu_custom_call.1} parent=1 // pred_fallthru
      _
    // Predicated region
    $region58: #{tpu_custom_call.1} parent=1 // pred_check
      _
    $region59: #{tpu_custom_call.1} parent=1 // pred_check_branch
      %937 = sbr.rel (0) target = $region61
    $region60: #{tpu_custom_call.1} parent=1 // pred_region
      _
    $region61: #{tpu_custom_call.1} parent=1 // pred_fallthru
      _
    // Predicated region
    $region62: #{tpu_custom_call.1} parent=1 // pred_check
      _
    $region63: #{tpu_custom_call.1} parent=1 // pred_check_branch
      %939 = sbr.rel (0) target = $region65
    $region64: #{tpu_custom_call.1} parent=1 // pred_region
      %940 = dma.done [#allocation7], 512
    $region65: #{tpu_custom_call.1} parent=1 // pred_fallthru
      _
    // Predicated region
    $region66: #{tpu_custom_call.1} parent=1 // pred_check
      _
    $region67: #{tpu_custom_call.1} parent=1 // pred_check_branch
      %942 = sbr.rel (0) target = $region69
    $region68: #{tpu_custom_call.1} parent=1 // pred_region
      _
    $region69: #{tpu_custom_call.1} parent=1 // pred_fallthru
      _
    // Predicated region
    $region70: #{tpu_custom_call.1} parent=1 // pred_check
      _
    $region71: #{tpu_custom_call.1} parent=1 // pred_check_branch
      %944 = sbr.rel (0) target = $region73
    $region72: #{tpu_custom_call.1} parent=1 // pred_region
      _
    $region73: #{tpu_custom_call.1} parent=1 // pred_fallthru
      _
    %945 = vsyncpa [#allocation6], 1
    %946 = vsyncpa [#allocation9], 1
    %947 = vsyncpa [#allocation7], 1

</llo_original>
